<compile_context>
chip_gen: v7x
topology: tpu7x:2x2x1
jax: 0.10.0
libtpu: 0.0.40
codegen_flags: <defaults>
</compile_context>

<pallas_src>
import functools

import jax
import jax.numpy as jnp
from jax.experimental import pallas as pl
from jax.experimental.pallas import tpu as pltpu


def cnn_kernel(x_ref, w_ref, b_ref, o_ref, *, P, Fp):
    # x_ref: (bb, C*L)   w_ref: (C*L, P*Fp)   b_ref: (1, Fp)   o_ref: (bb, Fp)
    y = jnp.dot(x_ref[...], w_ref[...],
                preferred_element_type=jnp.float32)          # one MXU matmul, f32 acc
    # MaxPool over the P conv positions: P lane-aligned 128-wide column slices.
    m = y[:, :Fp]
    for t in range(1, P):                                    # unrolled at trace time
        m = jnp.maximum(m, y[:, t * Fp:(t + 1) * Fp])
    # bias + ReLU commute exactly with the max (same bias at every position).
    m = jnp.maximum(m + b_ref[...].astype(jnp.float32), 0.0)
    o_ref[...] = m.astype(o_ref.dtype)                       # (bb, 128): unmasked vst


def cnn_forward(x, w, b, *, k=5, pad=1, block_b=128, compute_dtype=None):
    """x: (B, emb_size, m_word) NCL; w: (f, emb_size, k); b: (f,)  ->  (B, f)."""
    B, C, L = x.shape
    F = w.shape[0]
    P = L - k + 1                      # MaxPool1d kernel == conv positions that survive
    Fp = ((F + 127) // 128) * 128      # lane-dense output width
    CL = C * L

    # ---- Weights: banded "conv as one matmul" matrix (weight-side prep only; tiny,
    #      resident in VMEM).  Wbig[c*L + l, t*Fp + f] = w[f, c, l - (t - pad)] if valid.
    wcf = jnp.transpose(w, (1, 2, 0))                        # (C, k, F): wcf[c,j,f]=w[f,c,j]
    wcf = jnp.pad(wcf, ((0, 0), (0, 0), (0, Fp - F)))        # zero-pad F -> Fp
    col_blocks = []
    for t in range(P):
        lo = t - pad                                         # real column of tap j=0
        j0 = max(0, -lo)                                     # clip left padding
        j1 = min(k, L - lo)                                  # clip right edge
        blk = jnp.pad(wcf[:, j0:j1, :],
                      ((0, 0), (lo + j0, L - (lo + j1)), (0, 0)))   # (C, L, Fp)
        col_blocks.append(blk.reshape(CL, Fp))
    wbig = jnp.concatenate(col_blocks, axis=1)               # (C*L, P*Fp)
    b2 = jnp.pad(b.reshape(1, F), ((0, 0), (0, Fp - F)))     # padded bias lanes stay 0

    # ---- Activations: a single contiguous reshape.  No transpose, no im2col in HBM.
    x2 = x.reshape(B, CL)

    if compute_dtype is not None:      # e.g. jnp.bfloat16 on v6e/v7x (f32 accumulation)
        x2 = x2.astype(compute_dtype)
        wbig = wbig.astype(compute_dtype)

    # ---- Batch tiling: bb multiple of 8 (sublane), pad batch so every block is full.
    bb = max(8, ((min(block_b, B) + 7) // 8) * 8)
    nb = pl.cdiv(B, bb)
    Bp = nb * bb
    if Bp != B:
        x2 = jnp.pad(x2, ((0, Bp - B), (0, 0)))              # zero rows -> sliced off below

    itemsize = x2.dtype.itemsize
    cost = pl.CostEstimate(
        flops=2 * Bp * CL * P * Fp,
        transcendentals=0,
        bytes_accessed=(Bp * CL * itemsize + CL * P * Fp * wbig.dtype.itemsize
                        + Fp * 4 + Bp * Fp * x.dtype.itemsize),
    )

    kern = functools.partial(cnn_kernel, P=P, Fp=Fp)
    out = pl.pallas_call(
        kern,
        out_shape=jax.ShapeDtypeStruct((Bp, Fp), x.dtype),
        grid=(nb,),
        in_specs=[
            pl.BlockSpec((bb, CL), lambda i: (i, 0)),        # batch-tiled activations
            pl.BlockSpec((CL, P * Fp), lambda i: (0, 0)),    # banded weights: resident
            pl.BlockSpec((1, Fp), lambda i: (0, 0)),         # bias: resident
        ],
        out_specs=pl.BlockSpec((bb, Fp), lambda i: (i, 0)),
        compiler_params=pltpu.CompilerParams(
            dimension_semantics=("parallel",),               # independent batch blocks
        ),
        cost_estimate=cost,
    )(x2, wbig, b2)
    return out[:B, :F]


if __name__ == "__main__":
    # Shapes consistent with the a5 character-CNN: char-emb emb_size, word length m_word.
    emb_size, f, m_word, k = 32, 64, 12, 5
    batch = 48

    key = jax.random.PRNGKey(0)
    kx, kw, kb = jax.random.split(key, 3)
    x = jax.random.normal(kx, (batch, emb_size, m_word), dtype=jnp.float32)

    # Deterministic parameter init (uniform with torch's default 1/sqrt(fan_in) bound).
    bound = 1.0 / (emb_size * k) ** 0.5
    w = jax.random.uniform(kw, (f, emb_size, k), minval=-bound, maxval=bound,
                           dtype=jnp.float32)
    b = jax.random.uniform(kb, (f,), minval=-bound, maxval=bound, dtype=jnp.float32)

    # block_b=24 -> grid=(2,) with two full blocks (balanced across v7x's 2 TensorCores,
    # no padded half-block).
    out = jax.block_until_ready(cnn_forward(x, w, b, k=k, block_b=24))

    # Pure-JAX reference of the exact PyTorch semantics (conv pad=1, ReLU,
    # MaxPool1d(kernel=m_word-k+1) which only covers the first P conv positions).
    xp = jnp.pad(x, ((0, 0), (0, 0), (1, 1)))
    L_out = m_word + 2 - k + 1
    conv = jnp.stack(
        [jnp.einsum('bcw,fcw->bf', xp[:, :, t:t + k], w) for t in range(L_out)],
        axis=-1) + b[None, :, None]
    relu = jnp.maximum(conv, 0.0)
    P = m_word - k + 1
    ref = jnp.max(relu[:, :, :P], axis=-1)

    assert out.shape == (batch, f), out.shape
    assert jnp.allclose(out, ref, atol=1e-5, rtol=1e-5)

    # Also exercise the batch-pad / sublane round-up path (B=5 -> bb=8, 3 padded rows).
    out_small = jax.block_until_ready(cnn_forward(x[:5], w, b, k=k, block_b=128))
    assert jnp.allclose(out_small, ref[:5], atol=1e-5, rtol=1e-5)

    print("KERNEL_OK")
</pallas_src>

<mosaic_0001>
module attributes {stable_mosaic.version = 11 : i64} {
  func.func @cnn_kernel(%arg0: i32, %arg1: memref<24x384xf32, #tpu.memory_space<vmem>>, %arg2: memref<384x1024xf32, #tpu.memory_space<vmem>>, %arg3: memref<1x128xf32, #tpu.memory_space<vmem>>, %arg4: memref<24x128xf32, #tpu.memory_space<vmem>>) attributes {dimension_semantics = [#tpu.dimension_semantics<parallel>], iteration_bounds = array<i64: 2>, scalar_prefetch = 0 : i64, scratch_operands = 0 : i64, tpu.core_type = #tpu.core_type<tc>, window_params = [{transform_indices = @transform_0, window_bounds = array<i64: 24, 384>}, {pipeline_mode = #tpu.pipeline_mode<synchronous>, transform_indices = @transform_1, window_bounds = array<i64: 384, 1024>}, {pipeline_mode = #tpu.pipeline_mode<synchronous>, transform_indices = @transform_2, window_bounds = array<i64: 1, 128>}, {transform_indices = @transform_3, window_bounds = array<i64: 24, 128>}]} {
    %c0 = arith.constant 0 : index
    %c0_0 = arith.constant 0 : index
    %0 = vector.load %arg1[%c0, %c0_0] : memref<24x384xf32, #tpu.memory_space<vmem>>, vector<24x384xf32>
    %c0_1 = arith.constant 0 : index
    %c0_2 = arith.constant 0 : index
    %1 = vector.load %arg2[%c0_1, %c0_2] : memref<384x1024xf32, #tpu.memory_space<vmem>>, vector<384x1024xf32>
    %cst = arith.constant dense<0.000000e+00> : vector<24x1024xf32>
    %2 = tpu.matmul %0, %1, %cst {dimension_numbers = #tpu.dot_dimension_numbers<[1], [0], [0], [1], [0, 0, 1, 1], [], []>} : vector<24x384xf32>, vector<384x1024xf32>, vector<24x1024xf32> -> vector<24x1024xf32>
    %3 = vector.extract_strided_slice %2 {offsets = [0, 0], sizes = [24, 128], strides = [1, 1]} : vector<24x1024xf32> to vector<24x128xf32>
    %4 = vector.extract_strided_slice %2 {offsets = [0, 128], sizes = [24, 128], strides = [1, 1]} : vector<24x1024xf32> to vector<24x128xf32>
    %5 = arith.maximumf %3, %4 : vector<24x128xf32>
    %6 = vector.extract_strided_slice %2 {offsets = [0, 256], sizes = [24, 128], strides = [1, 1]} : vector<24x1024xf32> to vector<24x128xf32>
    %7 = arith.maximumf %5, %6 : vector<24x128xf32>
    %8 = vector.extract_strided_slice %2 {offsets = [0, 384], sizes = [24, 128], strides = [1, 1]} : vector<24x1024xf32> to vector<24x128xf32>
    %9 = arith.maximumf %7, %8 : vector<24x128xf32>
    %10 = vector.extract_strided_slice %2 {offsets = [0, 512], sizes = [24, 128], strides = [1, 1]} : vector<24x1024xf32> to vector<24x128xf32>
    %11 = arith.maximumf %9, %10 : vector<24x128xf32>
    %12 = vector.extract_strided_slice %2 {offsets = [0, 640], sizes = [24, 128], strides = [1, 1]} : vector<24x1024xf32> to vector<24x128xf32>
    %13 = arith.maximumf %11, %12 : vector<24x128xf32>
    %14 = vector.extract_strided_slice %2 {offsets = [0, 768], sizes = [24, 128], strides = [1, 1]} : vector<24x1024xf32> to vector<24x128xf32>
    %15 = arith.maximumf %13, %14 : vector<24x128xf32>
    %16 = vector.extract_strided_slice %2 {offsets = [0, 896], sizes = [24, 128], strides = [1, 1]} : vector<24x1024xf32> to vector<24x128xf32>
    %17 = arith.maximumf %15, %16 : vector<24x128xf32>
    %c0_3 = arith.constant 0 : index
    %c0_4 = arith.constant 0 : index
    %18 = vector.load %arg3[%c0_3, %c0_4] : memref<1x128xf32, #tpu.memory_space<vmem>>, vector<1x128xf32>
    %19 = vector.broadcast %18 : vector<1x128xf32> to vector<24x128xf32>
    %20 = arith.addf %17, %19 : vector<24x128xf32>
    %cst_5 = arith.constant 0.000000e+00 : f32
    %21 = vector.broadcast %cst_5 : f32 to vector<24x128xf32>
    %22 = arith.maximumf %20, %21 : vector<24x128xf32>
    %c0_6 = arith.constant 0 : index
    %c0_7 = arith.constant 0 : index
    %23 = vector.load %arg4[%c0_6, %c0_7] : memref<24x128xf32, #tpu.memory_space<vmem>>, vector<24x128xf32>
    tpu.vector_store %arg4[%c0_6, %c0_7], %22 {strides = array<i32>} : memref<24x128xf32, #tpu.memory_space<vmem>>, vector<24x128xf32>,
    return
  }
  func.func @transform_0(%arg0: i32) -> (i32, i32) {
    %c0_i32 = arith.constant 0 : i32
    %c0_i32_0 = arith.constant 0 : i32
    return %arg0, %c0_i32 : i32, i32
  }
  func.func @transform_1(%arg0: i32) -> (i32, i32) {
    %c0_i32 = arith.constant 0 : i32
    %c0_i32_0 = arith.constant 0 : i32
    %c0_i32_1 = arith.constant 0 : i32
    return %c0_i32, %c0_i32_0 : i32, i32
  }
  func.func @transform_2(%arg0: i32) -> (i32, i32) {
    %c0_i32 = arith.constant 0 : i32
    %c0_i32_0 = arith.constant 0 : i32
    %c0_i32_1 = arith.constant 0 : i32
    return %c0_i32, %c0_i32_0 : i32, i32
  }
  func.func @transform_3(%arg0: i32) -> (i32, i32) {
    %c0_i32 = arith.constant 0 : i32
    %c0_i32_0 = arith.constant 0 : i32
    return %arg0, %c0_i32 : i32, i32
  }
}

</mosaic_0001>

<llo_original>
// kernel: tpu_custom_call.1
$region0: #{tpu_custom_call.1}
  #allocation0 [shape = 'u32[]', space=smem, size = 0x4, offset = 0x4, fixed_abs, tag = 'smem constant byte address 0x4 - core index']
  #allocation1 [shape = 'u32[144,128]{1,0:T(1,128)}', space=vmem, size = 0x12000, scoped, tag = 'internal scratch']
  %s0 = inlined_call_operand.hbm [shape: f32[48,384], index: 0, kind: input, shape index: {}]
  %s1 = inlined_call_operand.hbm [shape: f32[384,1024], index: 1, kind: input, shape index: {}]
  %s2 = inlined_call_operand.hbm [shape: f32[1,128], index: 2, kind: input, shape index: {}]
  %s3 = inlined_call_operand.hbm [shape: f32[48,128], index: 3, kind: output, shape index: {}]
  %s4 = sld [smem:[#allocation0]]
  $region57: #{tpu_custom_call.1} parent=0
    _
  %s6 = ssub.s32 1, %s4
  %s7 = scalar_select 0, %s6, %s4
  $region1: #{tpu_custom_call.1} parent=0
    #allocation2 [shape = 'u8[73728]{0}', space=vmem, size = 0x12000, scoped, tag = 'input window, operand 0']
    #allocation3 [shape = 's32[2]{0}', space=sflag, size = 0x8, scoped, tag = 'scoped memory for tpu_custom_call.1']
    #allocation4 [shape = 's32[2]{0}', space=sflag, size = 0x8, scoped, tag = 'scoped memory for tpu_custom_call.1']
    #allocation5 [shape = 'u8[1572864]{0}', space=vmem, size = 0x180000, scoped, tag = 'input window, operand 1, single buffered']
    #allocation6 [shape = 's32[1]{0}', space=sflag, size = 0x4, scoped, tag = 'scoped memory for tpu_custom_call.1']
    #allocation7 [shape = 'u8[512]{0}', space=vmem, size = 0x400, scoped, tag = 'input window, operand 2, single buffered']
    #allocation8 [shape = 'u8[24576]{0}', space=vmem, size = 0x6000, scoped, tag = 'output window, operand 0']
    %8 = vsyncpa [#allocation3], 0
    %s9 = scalar_lea.sflag [#allocation3], 1
    %10 = vsyncpa %s9, 0
    %11 = vsyncpa [#allocation6], 0
    %12 = vsyncpa [#allocation4], 0
    %s13 = scalar_lea.sflag [#allocation4], 1
    %14 = vsyncpa %s13, 0
    loop: start=0, step=1, limit=4
    $region2: #{tpu_custom_call.1} parent=1 // loop_pre_header
      _
    $region3: #{tpu_custom_call.1} parent=1 // loop_header
      %s16 = sphi 0, %s20
      %p17 = scmp.ge.s32.totalorder %s16, 4
      %s26 = sphi 0, %s28
      %s29 = sphi 0, %s26
      %s30 = sphi 0, %s29
      %s46 = sphi 0, %s30
      %s50 = sphi 0, %s50
      %s52 = sphi 0, %s50
      %s53 = sphi 0, %s52
      %s67 = sphi 0, %s53
      %s71 = sphi 0, %s71
      %s73 = sphi 0, %s71
      %s74 = sphi 0, %s73
      %s88 = sphi 0, %s74
      %s94 = sphi 0, %s96
      %s97 = sphi 0, %s94
      %s98 = sphi 0, %s97
      %s114 = sphi 0, %s98
    $region4: #{tpu_custom_call.1} parent=1 // loop_header_branch
      %19 = sbr.rel (%p17) target = $region8
    $region5: #{tpu_custom_call.1} parent=1 // loop_body
      %s21 = ssub.s32 %s16, 1
      %s22 = ssub.s32 %s16, 2
      %s23 = sadd.s32 %s16, 1
      %s24 = ssub.s32 %s16, %s23
      %p25 = scmp.eq.s32.totalorder %s24, 0
      %s27 = sadd.s32 %s26, 1
      %s28 = scalar_select %p25, %s26, %s27
      %p31 = pneg %p25
      %p32 = scmp.eq.s32.totalorder %s16, 1
      %p33 = por %p31, %p32
      %p34 = scmp.ne.s32.totalorder %s26, %s29
      %p35 = scmp.eq.s32.totalorder %s16, 0
      %p36 = por %p34, %p35
      %p37 = scmp.ne.s32.totalorder %s26, %s29
      %p38 = scmp.eq.s32.totalorder %s21, 1
      %p39 = por %p37, %p38
      %p40 = scmp.ne.s32.totalorder %s29, %s30
      %p41 = scmp.eq.s32.totalorder %s21, 0
      %p42 = por %p40, %p41
      %p43 = scmp.ne.s32.totalorder %s29, %s30
      %p44 = scmp.eq.s32.totalorder %s22, 1
      %p45 = por %p43, %p44
      %p47 = scmp.ne.s32.totalorder %s30, %s46
      %p48 = scmp.eq.s32.totalorder %s22, 0
      %p49 = por %p47, %p48
      %s51 = sadd.s32 %s50, 1
      %p54 = scmp.eq.s32.totalorder %s16, 1
      %p55 = scmp.ne.s32.totalorder %s50, %s52
      %p56 = scmp.eq.s32.totalorder %s16, 0
      %p57 = por %p55, %p56
      %p58 = scmp.ne.s32.totalorder %s50, %s52
      %p59 = scmp.eq.s32.totalorder %s21, 1
      %p60 = por %p58, %p59
      %p61 = scmp.ne.s32.totalorder %s52, %s53
      %p62 = scmp.eq.s32.totalorder %s21, 0
      %p63 = por %p61, %p62
      %p64 = scmp.ne.s32.totalorder %s52, %s53
      %p65 = scmp.eq.s32.totalorder %s22, 1
      %p66 = por %p64, %p65
      %p68 = scmp.ne.s32.totalorder %s53, %s67
      %p69 = scmp.eq.s32.totalorder %s22, 0
      %p70 = por %p68, %p69
      %s72 = sadd.s32 %s71, 1
      %p75 = scmp.eq.s32.totalorder %s16, 1
      %p76 = scmp.ne.s32.totalorder %s71, %s73
      %p77 = scmp.eq.s32.totalorder %s16, 0
      %p78 = por %p76, %p77
      %p79 = scmp.ne.s32.totalorder %s71, %s73
      %p80 = scmp.eq.s32.totalorder %s21, 1
      %p81 = por %p79, %p80
      %p82 = scmp.ne.s32.totalorder %s73, %s74
      %p83 = scmp.eq.s32.totalorder %s21, 0
      %p84 = por %p82, %p83
      %p85 = scmp.ne.s32.totalorder %s73, %s74
      %p86 = scmp.eq.s32.totalorder %s22, 1
      %p87 = por %p85, %p86
      %p89 = scmp.ne.s32.totalorder %s74, %s88
      %p90 = scmp.eq.s32.totalorder %s22, 0
      %p91 = por %p89, %p90
      %s92 = ssub.s32 %s16, %s23
      %p93 = scmp.eq.s32.totalorder %s92, 0
      %s95 = sadd.s32 %s94, 1
      %s96 = scalar_select %p93, %s94, %s95
      %p99 = pneg %p93
      %p100 = scmp.eq.s32.totalorder %s16, 1
      %p101 = por %p99, %p100
      %p102 = scmp.ne.s32.totalorder %s94, %s97
      %p103 = scmp.eq.s32.totalorder %s16, 0
      %p104 = por %p102, %p103
      %p105 = scmp.ne.s32.totalorder %s94, %s97
      %p106 = scmp.eq.s32.totalorder %s21, 1
      %p107 = por %p105, %p106
      %p108 = scmp.ne.s32.totalorder %s97, %s98
      %p109 = scmp.eq.s32.totalorder %s21, 0
      %p110 = por %p108, %p109
      %p111 = scmp.ne.s32.totalorder %s97, %s98
      %p112 = scmp.eq.s32.totalorder %s22, 1
      %p113 = por %p111, %p112
      %p115 = scmp.ne.s32.totalorder %s98, %s114
      %p116 = scmp.eq.s32.totalorder %s22, 0
      %p117 = por %p115, %p116
      %p118 = scmp.le.s32.totalorder 1, %s16
      %p119 = scmp.lt.s32.totalorder %s16, 3
      %p120 = pnand %p118, %p119
      %p121 = pneg %p120
      // Predicated region
      $region9: #{tpu_custom_call.1} parent=5 // pred_check
        _
      $region10: #{tpu_custom_call.1} parent=5 // pred_check_branch
        %123 = sbr.rel (%p120) target = $region12
      $region11: #{tpu_custom_call.1} parent=5 // pred_region
        %s124 = ssub.s32 %s16, 1
        // Predicated region
        $region13: #{tpu_custom_call.1} parent=11 // pred_check
          %p125 = pneg %p63
        $region14: #{tpu_custom_call.1} parent=11 // pred_check_branch
          %127 = sbr.rel (%p125) target = $region16
        $region15: #{tpu_custom_call.1} parent=11 // pred_region
          %s129 = ssub.s32 49152, 49152
          %130 = vsyncadd [#allocation6], %s129
          %s131 = sshll.u32 [#allocation5], 4
          %s132 = int_to_ptr.vmem [resolvable:$true] %s131
          %137 = dma.hbm_to_vmem [thread:$0]  %s1, 49152, %s132, [#allocation6], 1024, 1024, 64
        $region16: #{tpu_custom_call.1} parent=11 // pred_fallthru
          _
        // Predicated region
        $region17: #{tpu_custom_call.1} parent=11 // pred_check
          %p138 = pneg %p84
        $region18: #{tpu_custom_call.1} parent=11 // pred_check_branch
          %140 = sbr.rel (%p138) target = $region20
        $region19: #{tpu_custom_call.1} parent=11 // pred_region
          %s142 = ssub.s32 16, 16
          %143 = vsyncadd [#allocation6], %s142
          %s145 = sshll.u32 [#allocation7], 4
          %s146 = int_to_ptr.vmem [resolvable:$true] %s145
          %148 = dma.hbm_to_vmem [thread:$0]  %s2, 16, %s146, [#allocation6]
        $region20: #{tpu_custom_call.1} parent=11 // pred_fallthru
          _
      $region12: #{tpu_custom_call.1} parent=5 // pred_fallthru
        _
      %p149 = scmp.lt.s32.totalorder %s16, 2
      // Predicated region
      $region21: #{tpu_custom_call.1} parent=5 // pred_check
        %p150 = pneg %p149
      $region22: #{tpu_custom_call.1} parent=5 // pred_check_branch
        %152 = sbr.rel (%p150) target = $region24
      $region23: #{tpu_custom_call.1} parent=5 // pred_region
        // Predicated region
        $region25: #{tpu_custom_call.1} parent=23 // pred_check
          %p153 = pneg %p36
        $region26: #{tpu_custom_call.1} parent=23 // pred_check_branch
          %155 = sbr.rel (%p153) target = $region28
        $region27: #{tpu_custom_call.1} parent=23 // pred_region
          %s156 = sand.u32 %s26, 1
          %s157 = scalar_lea.sflag [#allocation3], %s156
          %s158 = sand.u32 %s26, 1
          %s159 = smul.addr %s158, 72
          %s160 = scalar_lea.vmem [#allocation2], %s159
          %s161 = smul.u32 3, %s16
          %s163 = ssub.s32 1152, 1152
          %164 = vsyncadd %s157, %s163
          %s165 = smul.addr %s161, 3
          %s166 = smul.addr %s165, 128
          %s167 = scalar_lea.hbm %s0, %s166
          %s168 = sshll.u32 %s160, 4
          %s169 = int_to_ptr.vmem [resolvable:$true] %s168
          %174 = dma.hbm_to_vmem [thread:$0]  %s167, 1152, %s169, %s157, 384, 384, 24
        $region28: #{tpu_custom_call.1} parent=23 // pred_fallthru
          _
      $region24: #{tpu_custom_call.1} parent=5 // pred_fallthru
        _
      %p175 = scmp.le.s32.totalorder 1, %s16
      %p176 = scmp.lt.s32.totalorder %s16, 3
      %p177 = pnand %p175, %p176
      %p178 = pneg %p177
      // Predicated region
      $region29: #{tpu_custom_call.1} parent=5 // pred_check
        _
      $region30: #{tpu_custom_call.1} parent=5 // pred_check_branch
        %180 = sbr.rel (%p177) target = $region32
      $region31: #{tpu_custom_call.1} parent=5 // pred_region
        %s181 = ssub.s32 %s16, 1
        %s182 = sand.u32 %s29, 1
        %s183 = scalar_lea.sflag [#allocation3], %s182
        %s184 = sand.u32 %s29, 1
        %s185 = smul.addr %s184, 72
        %s186 = scalar_lea.vmem [#allocation2], %s185
        // Predicated region
        $region33: #{tpu_custom_call.1} parent=31 // pred_check
          %p187 = pneg %p42
        $region34: #{tpu_custom_call.1} parent=31 // pred_check_branch
          %189 = sbr.rel (%p187) target = $region36
        $region35: #{tpu_custom_call.1} parent=31 // pred_region
          %190 = dma.done %s183, 1152
        $region36: #{tpu_custom_call.1} parent=31 // pred_fallthru
          _
        // Predicated region
        $region37: #{tpu_custom_call.1} parent=31 // pred_check
          %p191 = pneg %p63
        $region38: #{tpu_custom_call.1} parent=31 // pred_check_branch
          %193 = sbr.rel (%p191) target = $region40
        $region39: #{tpu_custom_call.1} parent=31 // pred_region
          %194 = dma.done [#allocation6], 49152
        $region40: #{tpu_custom_call.1} parent=31 // pred_fallthru
          _
        // Predicated region
        $region41: #{tpu_custom_call.1} parent=31 // pred_check
          %p195 = pneg %p84
        $region42: #{tpu_custom_call.1} parent=31 // pred_check_branch
          %197 = sbr.rel (%p195) target = $region44
        $region43: #{tpu_custom_call.1} parent=31 // pred_region
          %198 = dma.done [#allocation6], 16
        $region44: #{tpu_custom_call.1} parent=31 // pred_fallthru
          _
        %s199 = sand.u32 %s29, 1
        %s200 = scalar_lea.sflag [#allocation3], %s199
        %s201 = sand.u32 %s29, 1
        %s202 = smul.addr %s201, 72
        %s203 = scalar_lea.vmem [#allocation2], %s202
        %p204 = pneg %p42
        %p205 = pneg %p39
        %p206 = pneg %p63
        %p207 = pneg %p60
        %p208 = pneg %p84
        %p209 = pneg %p81
        %p210 = pneg %p110
        %p211 = pneg %p107
        %s212 = sand.u32 %s97, 1
        %s213 = scalar_lea.sflag [#allocation4], %s212
        %s214 = sand.u32 %s97, 1
        %s215 = smul.addr %s214, 24
        %s216 = scalar_lea.vmem [#allocation8], %s215
        %s217 = smul.u32 3, %s21
        %s218 = smul.u32 3, %s21
        %v219 = vld [vmem:[%s186] sm:$0xff]
        %v220 = vld [vmem:[%s186 + $0x8] sm:$0xff]
        %v221 = vld [vmem:[%s186 + $0x10] sm:$0xff]
        %v222 = vld [vmem:[%s186 + $0x18] sm:$0xff]
        %v223 = vld [vmem:[%s186 + $0x20] sm:$0xff]
        %v224 = vld [vmem:[%s186 + $0x28] sm:$0xff]
        %v225 = vld [vmem:[%s186 + $0x30] sm:$0xff]
        %v226 = vld [vmem:[%s186 + $0x38] sm:$0xff]
        %v227 = vld [vmem:[%s186 + $0x40] sm:$0xff]
        %v228 = vld [vmem:[#allocation5] sm:$0xff]
        %v229 = vld [vmem:[#allocation5 + $0x8] sm:$0xff]
        %v230 = vld [vmem:[#allocation5 + $0x10] sm:$0xff]
        %v231 = vld [vmem:[#allocation5 + $0x18] sm:$0xff]
        %v232 = vld [vmem:[#allocation5 + $0x20] sm:$0xff]
        %v233 = vld [vmem:[#allocation5 + $0x28] sm:$0xff]
        %v234 = vld [vmem:[#allocation5 + $0x30] sm:$0xff]
        %v235 = vld [vmem:[#allocation5 + $0x38] sm:$0xff]
        %v236 = vld [vmem:[#allocation5 + $0x40] sm:$0xff]
        %v237 = vld [vmem:[#allocation5 + $0x48] sm:$0xff]
        %v238 = vld [vmem:[#allocation5 + $0x50] sm:$0xff]
        %v239 = vld [vmem:[#allocation5 + $0x58] sm:$0xff]
        %v240 = vld [vmem:[#allocation5 + $0x60] sm:$0xff]
        %v241 = vld [vmem:[#allocation5 + $0x68] sm:$0xff]
        %v242 = vld [vmem:[#allocation5 + $0x70] sm:$0xff]
        %v243 = vld [vmem:[#allocation5 + $0x78] sm:$0xff]
        %v244 = vld [vmem:[#allocation5 + $0x80] sm:$0xff]
        %v245 = vld [vmem:[#allocation5 + $0x88] sm:$0xff]
        %v246 = vld [vmem:[#allocation5 + $0x90] sm:$0xff]
        %v247 = vld [vmem:[#allocation5 + $0x98] sm:$0xff]
        %v248 = vld [vmem:[#allocation5 + $0xa0] sm:$0xff]
        %v249 = vld [vmem:[#allocation5 + $0xa8] sm:$0xff]
        %v250 = vld [vmem:[#allocation5 + $0xb0] sm:$0xff]
        %v251 = vld [vmem:[#allocation5 + $0xb8] sm:$0xff]
        %v252 = vld [vmem:[#allocation5 + $0xc0] sm:$0xff]
        %v253 = vld [vmem:[#allocation5 + $0xc8] sm:$0xff]
        %v254 = vld [vmem:[#allocation5 + $0xd0] sm:$0xff]
        %v255 = vld [vmem:[#allocation5 + $0xd8] sm:$0xff]
        %v256 = vld [vmem:[#allocation5 + $0xe0] sm:$0xff]
        %v257 = vld [vmem:[#allocation5 + $0xe8] sm:$0xff]
        %v258 = vld [vmem:[#allocation5 + $0xf0] sm:$0xff]
        %v259 = vld [vmem:[#allocation5 + $0xf8] sm:$0xff]
        %v260 = vld [vmem:[#allocation5 + $0x100] sm:$0xff]
        %v261 = vld [vmem:[#allocation5 + $0x108] sm:$0xff]
        %v262 = vld [vmem:[#allocation5 + $0x110] sm:$0xff]
        %v263 = vld [vmem:[#allocation5 + $0x118] sm:$0xff]
        %v264 = vld [vmem:[#allocation5 + $0x120] sm:$0xff]
        %v265 = vld [vmem:[#allocation5 + $0x128] sm:$0xff]
        %v266 = vld [vmem:[#allocation5 + $0x130] sm:$0xff]
        %v267 = vld [vmem:[#allocation5 + $0x138] sm:$0xff]
        %v268 = vld [vmem:[#allocation5 + $0x140] sm:$0xff]
        %v269 = vld [vmem:[#allocation5 + $0x148] sm:$0xff]
        %v270 = vld [vmem:[#allocation5 + $0x150] sm:$0xff]
        %v271 = vld [vmem:[#allocation5 + $0x158] sm:$0xff]
        %v272 = vld [vmem:[#allocation5 + $0x160] sm:$0xff]
        %v273 = vld [vmem:[#allocation5 + $0x168] sm:$0xff]
        %v274 = vld [vmem:[#allocation5 + $0x170] sm:$0xff]
        %v275 = vld [vmem:[#allocation5 + $0x178] sm:$0xff]
        %v276 = vld [vmem:[#allocation5 + $0x180] sm:$0xff]
        %v277 = vld [vmem:[#allocation5 + $0x188] sm:$0xff]
        %v278 = vld [vmem:[#allocation5 + $0x190] sm:$0xff]
        %v279 = vld [vmem:[#allocation5 + $0x198] sm:$0xff]
        %v280 = vld [vmem:[#allocation5 + $0x1a0] sm:$0xff]
        %v281 = vld [vmem:[#allocation5 + $0x1a8] sm:$0xff]
        %v282 = vld [vmem:[#allocation5 + $0x1b0] sm:$0xff]
        %v283 = vld [vmem:[#allocation5 + $0x1b8] sm:$0xff]
        %v284 = vld [vmem:[#allocation5 + $0x1c0] sm:$0xff]
        %v285 = vld [vmem:[#allocation5 + $0x1c8] sm:$0xff]
        %v286 = vld [vmem:[#allocation5 + $0x1d0] sm:$0xff]
        %v287 = vld [vmem:[#allocation5 + $0x1d8] sm:$0xff]
        %v288 = vld [vmem:[#allocation5 + $0x1e0] sm:$0xff]
        %v289 = vld [vmem:[#allocation5 + $0x1e8] sm:$0xff]
        %v290 = vld [vmem:[#allocation5 + $0x1f0] sm:$0xff]
        %v291 = vld [vmem:[#allocation5 + $0x1f8] sm:$0xff]
        %v292 = vld [vmem:[#allocation5 + $0x200] sm:$0xff]
        %v293 = vld [vmem:[#allocation5 + $0x208] sm:$0xff]
        %v294 = vld [vmem:[#allocation5 + $0x210] sm:$0xff]
        %v295 = vld [vmem:[#allocation5 + $0x218] sm:$0xff]
        %v296 = vld [vmem:[#allocation5 + $0x220] sm:$0xff]
        %v297 = vld [vmem:[#allocation5 + $0x228] sm:$0xff]
        %v298 = vld [vmem:[#allocation5 + $0x230] sm:$0xff]
        %v299 = vld [vmem:[#allocation5 + $0x238] sm:$0xff]
        %v300 = vld [vmem:[#allocation5 + $0x240] sm:$0xff]
        %v301 = vld [vmem:[#allocation5 + $0x248] sm:$0xff]
        %v302 = vld [vmem:[#allocation5 + $0x250] sm:$0xff]
        %v303 = vld [vmem:[#allocation5 + $0x258] sm:$0xff]
        %v304 = vld [vmem:[#allocation5 + $0x260] sm:$0xff]
        %v305 = vld [vmem:[#allocation5 + $0x268] sm:$0xff]
        %v306 = vld [vmem:[#allocation5 + $0x270] sm:$0xff]
        %v307 = vld [vmem:[#allocation5 + $0x278] sm:$0xff]
        %v308 = vld [vmem:[#allocation5 + $0x280] sm:$0xff]
        %v309 = vld [vmem:[#allocation5 + $0x288] sm:$0xff]
        %v310 = vld [vmem:[#allocation5 + $0x290] sm:$0xff]
        %v311 = vld [vmem:[#allocation5 + $0x298] sm:$0xff]
        %v312 = vld [vmem:[#allocation5 + $0x2a0] sm:$0xff]
        %v313 = vld [vmem:[#allocation5 + $0x2a8] sm:$0xff]
        %v314 = vld [vmem:[#allocation5 + $0x2b0] sm:$0xff]
        %v315 = vld [vmem:[#allocation5 + $0x2b8] sm:$0xff]
        %v316 = vld [vmem:[#allocation5 + $0x2c0] sm:$0xff]
        %v317 = vld [vmem:[#allocation5 + $0x2c8] sm:$0xff]
        %v318 = vld [vmem:[#allocation5 + $0x2d0] sm:$0xff]
        %v319 = vld [vmem:[#allocation5 + $0x2d8] sm:$0xff]
        %v320 = vld [vmem:[#allocation5 + $0x2e0] sm:$0xff]
        %v321 = vld [vmem:[#allocation5 + $0x2e8] sm:$0xff]
        %v322 = vld [vmem:[#allocation5 + $0x2f0] sm:$0xff]
        %v323 = vld [vmem:[#allocation5 + $0x2f8] sm:$0xff]
        %v324 = vld [vmem:[#allocation5 + $0x300] sm:$0xff]
        %v325 = vld [vmem:[#allocation5 + $0x308] sm:$0xff]
        %v326 = vld [vmem:[#allocation5 + $0x310] sm:$0xff]
        %v327 = vld [vmem:[#allocation5 + $0x318] sm:$0xff]
        %v328 = vld [vmem:[#allocation5 + $0x320] sm:$0xff]
        %v329 = vld [vmem:[#allocation5 + $0x328] sm:$0xff]
        %v330 = vld [vmem:[#allocation5 + $0x330] sm:$0xff]
        %v331 = vld [vmem:[#allocation5 + $0x338] sm:$0xff]
        %v332 = vld [vmem:[#allocation5 + $0x340] sm:$0xff]
        %v333 = vld [vmem:[#allocation5 + $0x348] sm:$0xff]
        %v334 = vld [vmem:[#allocation5 + $0x350] sm:$0xff]
        %v335 = vld [vmem:[#allocation5 + $0x358] sm:$0xff]
        %v336 = vld [vmem:[#allocation5 + $0x360] sm:$0xff]
        %v337 = vld [vmem:[#allocation5 + $0x368] sm:$0xff]
        %v338 = vld [vmem:[#allocation5 + $0x370] sm:$0xff]
        %v339 = vld [vmem:[#allocation5 + $0x378] sm:$0xff]
        %v340 = vld [vmem:[#allocation5 + $0x380] sm:$0xff]
        %v341 = vld [vmem:[#allocation5 + $0x388] sm:$0xff]
        %v342 = vld [vmem:[#allocation5 + $0x390] sm:$0xff]
        %v343 = vld [vmem:[#allocation5 + $0x398] sm:$0xff]
        %v344 = vld [vmem:[#allocation5 + $0x3a0] sm:$0xff]
        %v345 = vld [vmem:[#allocation5 + $0x3a8] sm:$0xff]
        %v346 = vld [vmem:[#allocation5 + $0x3b0] sm:$0xff]
        %v347 = vld [vmem:[#allocation5 + $0x3b8] sm:$0xff]
        %v348 = vld [vmem:[#allocation5 + $0x3c0] sm:$0xff]
        %v349 = vld [vmem:[#allocation5 + $0x3c8] sm:$0xff]
        %v350 = vld [vmem:[#allocation5 + $0x3d0] sm:$0xff]
        %v351 = vld [vmem:[#allocation5 + $0x3d8] sm:$0xff]
        %v352 = vld [vmem:[#allocation5 + $0x3e0] sm:$0xff]
        %v353 = vld [vmem:[#allocation5 + $0x3e8] sm:$0xff]
        %v354 = vld [vmem:[#allocation5 + $0x3f0] sm:$0xff]
        %v355 = vld [vmem:[#allocation5 + $0x3f8] sm:$0xff]
        %v356 = vld [vmem:[#allocation5 + $0x400] sm:$0xff]
        %v357 = vld [vmem:[#allocation5 + $0x408] sm:$0xff]
        %v358 = vld [vmem:[#allocation5 + $0x410] sm:$0xff]
        %v359 = vld [vmem:[#allocation5 + $0x418] sm:$0xff]
        %v360 = vld [vmem:[#allocation5 + $0x420] sm:$0xff]
        %v361 = vld [vmem:[#allocation5 + $0x428] sm:$0xff]
        %v362 = vld [vmem:[#allocation5 + $0x430] sm:$0xff]
        %v363 = vld [vmem:[#allocation5 + $0x438] sm:$0xff]
        %v364 = vld [vmem:[#allocation5 + $0x440] sm:$0xff]
        %v365 = vld [vmem:[#allocation5 + $0x448] sm:$0xff]
        %v366 = vld [vmem:[#allocation5 + $0x450] sm:$0xff]
        %v367 = vld [vmem:[#allocation5 + $0x458] sm:$0xff]
        %v368 = vld [vmem:[#allocation5 + $0x460] sm:$0xff]
        %v369 = vld [vmem:[#allocation5 + $0x468] sm:$0xff]
        %v370 = vld [vmem:[#allocation5 + $0x470] sm:$0xff]
        %v371 = vld [vmem:[#allocation5 + $0x478] sm:$0xff]
        %v372 = vld [vmem:[#allocation5 + $0x480] sm:$0xff]
        %v373 = vld [vmem:[#allocation5 + $0x488] sm:$0xff]
        %v374 = vld [vmem:[#allocation5 + $0x490] sm:$0xff]
        %v375 = vld [vmem:[#allocation5 + $0x498] sm:$0xff]
        %v376 = vld [vmem:[#allocation5 + $0x4a0] sm:$0xff]
        %v377 = vld [vmem:[#allocation5 + $0x4a8] sm:$0xff]
        %v378 = vld [vmem:[#allocation5 + $0x4b0] sm:$0xff]
        %v379 = vld [vmem:[#allocation5 + $0x4b8] sm:$0xff]
        %v380 = vld [vmem:[#allocation5 + $0x4c0] sm:$0xff]
        %v381 = vld [vmem:[#allocation5 + $0x4c8] sm:$0xff]
        %v382 = vld [vmem:[#allocation5 + $0x4d0] sm:$0xff]
        %v383 = vld [vmem:[#allocation5 + $0x4d8] sm:$0xff]
        %v384 = vld [vmem:[#allocation5 + $0x4e0] sm:$0xff]
        %v385 = vld [vmem:[#allocation5 + $0x4e8] sm:$0xff]
        %v386 = vld [vmem:[#allocation5 + $0x4f0] sm:$0xff]
        %v387 = vld [vmem:[#allocation5 + $0x4f8] sm:$0xff]
        %v388 = vld [vmem:[#allocation5 + $0x500] sm:$0xff]
        %v389 = vld [vmem:[#allocation5 + $0x508] sm:$0xff]
        %v390 = vld [vmem:[#allocation5 + $0x510] sm:$0xff]
        %v391 = vld [vmem:[#allocation5 + $0x518] sm:$0xff]
        %v392 = vld [vmem:[#allocation5 + $0x520] sm:$0xff]
        %v393 = vld [vmem:[#allocation5 + $0x528] sm:$0xff]
        %v394 = vld [vmem:[#allocation5 + $0x530] sm:$0xff]
        %v395 = vld [vmem:[#allocation5 + $0x538] sm:$0xff]
        %v396 = vld [vmem:[#allocation5 + $0x540] sm:$0xff]
        %v397 = vld [vmem:[#allocation5 + $0x548] sm:$0xff]
        %v398 = vld [vmem:[#allocation5 + $0x550] sm:$0xff]
        %v399 = vld [vmem:[#allocation5 + $0x558] sm:$0xff]
        %v400 = vld [vmem:[#allocation5 + $0x560] sm:$0xff]
        %v401 = vld [vmem:[#allocation5 + $0x568] sm:$0xff]
        %v402 = vld [vmem:[#allocation5 + $0x570] sm:$0xff]
        %v403 = vld [vmem:[#allocation5 + $0x578] sm:$0xff]
        %v404 = vld [vmem:[#allocation5 + $0x580] sm:$0xff]
        %v405 = vld [vmem:[#allocation5 + $0x588] sm:$0xff]
        %v406 = vld [vmem:[#allocation5 + $0x590] sm:$0xff]
        %v407 = vld [vmem:[#allocation5 + $0x598] sm:$0xff]
        %v408 = vld [vmem:[#allocation5 + $0x5a0] sm:$0xff]
        %v409 = vld [vmem:[#allocation5 + $0x5a8] sm:$0xff]
        %v410 = vld [vmem:[#allocation5 + $0x5b0] sm:$0xff]
        %v411 = vld [vmem:[#allocation5 + $0x5b8] sm:$0xff]
        %v412 = vld [vmem:[#allocation5 + $0x5c0] sm:$0xff]
        %v413 = vld [vmem:[#allocation5 + $0x5c8] sm:$0xff]
        %v414 = vld [vmem:[#allocation5 + $0x5d0] sm:$0xff]
        %v415 = vld [vmem:[#allocation5 + $0x5d8] sm:$0xff]
        %v416 = vld [vmem:[#allocation5 + $0x5e0] sm:$0xff]
        %v417 = vld [vmem:[#allocation5 + $0x5e8] sm:$0xff]
        %v418 = vld [vmem:[#allocation5 + $0x5f0] sm:$0xff]
        %v419 = vld [vmem:[#allocation5 + $0x5f8] sm:$0xff]
        %v420 = vld [vmem:[#allocation5 + $0x600] sm:$0xff]
        %v421 = vld [vmem:[#allocation5 + $0x608] sm:$0xff]
        %v422 = vld [vmem:[#allocation5 + $0x610] sm:$0xff]
        %v423 = vld [vmem:[#allocation5 + $0x618] sm:$0xff]
        %v424 = vld [vmem:[#allocation5 + $0x620] sm:$0xff]
        %v425 = vld [vmem:[#allocation5 + $0x628] sm:$0xff]
        %v426 = vld [vmem:[#allocation5 + $0x630] sm:$0xff]
        %v427 = vld [vmem:[#allocation5 + $0x638] sm:$0xff]
        %v428 = vld [vmem:[#allocation5 + $0x640] sm:$0xff]
        %v429 = vld [vmem:[#allocation5 + $0x648] sm:$0xff]
        %v430 = vld [vmem:[#allocation5 + $0x650] sm:$0xff]
        %v431 = vld [vmem:[#allocation5 + $0x658] sm:$0xff]
        %v432 = vld [vmem:[#allocation5 + $0x660] sm:$0xff]
        %v433 = vld [vmem:[#allocation5 + $0x668] sm:$0xff]
        %v434 = vld [vmem:[#allocation5 + $0x670] sm:$0xff]
        %v435 = vld [vmem:[#allocation5 + $0x678] sm:$0xff]
        %v436 = vld [vmem:[#allocation5 + $0x680] sm:$0xff]
        %v437 = vld [vmem:[#allocation5 + $0x688] sm:$0xff]
        %v438 = vld [vmem:[#allocation5 + $0x690] sm:$0xff]
        %v439 = vld [vmem:[#allocation5 + $0x698] sm:$0xff]
        %v440 = vld [vmem:[#allocation5 + $0x6a0] sm:$0xff]
        %v441 = vld [vmem:[#allocation5 + $0x6a8] sm:$0xff]
        %v442 = vld [vmem:[#allocation5 + $0x6b0] sm:$0xff]
        %v443 = vld [vmem:[#allocation5 + $0x6b8] sm:$0xff]
        %v444 = vld [vmem:[#allocation5 + $0x6c0] sm:$0xff]
        %v445 = vld [vmem:[#allocation5 + $0x6c8] sm:$0xff]
        %v446 = vld [vmem:[#allocation5 + $0x6d0] sm:$0xff]
        %v447 = vld [vmem:[#allocation5 + $0x6d8] sm:$0xff]
        %v448 = vld [vmem:[#allocation5 + $0x6e0] sm:$0xff]
        %v449 = vld [vmem:[#allocation5 + $0x6e8] sm:$0xff]
        %v450 = vld [vmem:[#allocation5 + $0x6f0] sm:$0xff]
        %v451 = vld [vmem:[#allocation5 + $0x6f8] sm:$0xff]
        %v452 = vld [vmem:[#allocation5 + $0x700] sm:$0xff]
        %v453 = vld [vmem:[#allocation5 + $0x708] sm:$0xff]
        %v454 = vld [vmem:[#allocation5 + $0x710] sm:$0xff]
        %v455 = vld [vmem:[#allocation5 + $0x718] sm:$0xff]
        %v456 = vld [vmem:[#allocation5 + $0x720] sm:$0xff]
        %v457 = vld [vmem:[#allocation5 + $0x728] sm:$0xff]
        %v458 = vld [vmem:[#allocation5 + $0x730] sm:$0xff]
        %v459 = vld [vmem:[#allocation5 + $0x738] sm:$0xff]
        %v460 = vld [vmem:[#allocation5 + $0x740] sm:$0xff]
        %v461 = vld [vmem:[#allocation5 + $0x748] sm:$0xff]
        %v462 = vld [vmem:[#allocation5 + $0x750] sm:$0xff]
        %v463 = vld [vmem:[#allocation5 + $0x758] sm:$0xff]
        %v464 = vld [vmem:[#allocation5 + $0x760] sm:$0xff]
        %v465 = vld [vmem:[#allocation5 + $0x768] sm:$0xff]
        %v466 = vld [vmem:[#allocation5 + $0x770] sm:$0xff]
        %v467 = vld [vmem:[#allocation5 + $0x778] sm:$0xff]
        %v468 = vld [vmem:[#allocation5 + $0x780] sm:$0xff]
        %v469 = vld [vmem:[#allocation5 + $0x788] sm:$0xff]
        %v470 = vld [vmem:[#allocation5 + $0x790] sm:$0xff]
        %v471 = vld [vmem:[#allocation5 + $0x798] sm:$0xff]
        %v472 = vld [vmem:[#allocation5 + $0x7a0] sm:$0xff]
        %v473 = vld [vmem:[#allocation5 + $0x7a8] sm:$0xff]
        %v474 = vld [vmem:[#allocation5 + $0x7b0] sm:$0xff]
        %v475 = vld [vmem:[#allocation5 + $0x7b8] sm:$0xff]
        %v476 = vld [vmem:[#allocation5 + $0x7c0] sm:$0xff]
        %v477 = vld [vmem:[#allocation5 + $0x7c8] sm:$0xff]
        %v478 = vld [vmem:[#allocation5 + $0x7d0] sm:$0xff]
        %v479 = vld [vmem:[#allocation5 + $0x7d8] sm:$0xff]
        %v480 = vld [vmem:[#allocation5 + $0x7e0] sm:$0xff]
        %v481 = vld [vmem:[#allocation5 + $0x7e8] sm:$0xff]
        %v482 = vld [vmem:[#allocation5 + $0x7f0] sm:$0xff]
        %v483 = vld [vmem:[#allocation5 + $0x7f8] sm:$0xff]
        %v484 = vld [vmem:[#allocation5 + $0x800] sm:$0xff]
        %v485 = vld [vmem:[#allocation5 + $0x808] sm:$0xff]
        %v486 = vld [vmem:[#allocation5 + $0x810] sm:$0xff]
        %v487 = vld [vmem:[#allocation5 + $0x818] sm:$0xff]
        %v488 = vld [vmem:[#allocation5 + $0x820] sm:$0xff]
        %v489 = vld [vmem:[#allocation5 + $0x828] sm:$0xff]
        %v490 = vld [vmem:[#allocation5 + $0x830] sm:$0xff]
        %v491 = vld [vmem:[#allocation5 + $0x838] sm:$0xff]
        %v492 = vld [vmem:[#allocation5 + $0x840] sm:$0xff]
        %v493 = vld [vmem:[#allocation5 + $0x848] sm:$0xff]
        %v494 = vld [vmem:[#allocation5 + $0x850] sm:$0xff]
        %v495 = vld [vmem:[#allocation5 + $0x858] sm:$0xff]
        %v496 = vld [vmem:[#allocation5 + $0x860] sm:$0xff]
        %v497 = vld [vmem:[#allocation5 + $0x868] sm:$0xff]
        %v498 = vld [vmem:[#allocation5 + $0x870] sm:$0xff]
        %v499 = vld [vmem:[#allocation5 + $0x878] sm:$0xff]
        %v500 = vld [vmem:[#allocation5 + $0x880] sm:$0xff]
        %v501 = vld [vmem:[#allocation5 + $0x888] sm:$0xff]
        %v502 = vld [vmem:[#allocation5 + $0x890] sm:$0xff]
        %v503 = vld [vmem:[#allocation5 + $0x898] sm:$0xff]
        %v504 = vld [vmem:[#allocation5 + $0x8a0] sm:$0xff]
        %v505 = vld [vmem:[#allocation5 + $0x8a8] sm:$0xff]
        %v506 = vld [vmem:[#allocation5 + $0x8b0] sm:$0xff]
        %v507 = vld [vmem:[#allocation5 + $0x8b8] sm:$0xff]
        %v508 = vld [vmem:[#allocation5 + $0x8c0] sm:$0xff]
        %v509 = vld [vmem:[#allocation5 + $0x8c8] sm:$0xff]
        %v510 = vld [vmem:[#allocation5 + $0x8d0] sm:$0xff]
        %v511 = vld [vmem:[#allocation5 + $0x8d8] sm:$0xff]
        %v512 = vld [vmem:[#allocation5 + $0x8e0] sm:$0xff]
        %v513 = vld [vmem:[#allocation5 + $0x8e8] sm:$0xff]
        %v514 = vld [vmem:[#allocation5 + $0x8f0] sm:$0xff]
        %v515 = vld [vmem:[#allocation5 + $0x8f8] sm:$0xff]
        %v516 = vld [vmem:[#allocation5 + $0x900] sm:$0xff]
        %v517 = vld [vmem:[#allocation5 + $0x908] sm:$0xff]
        %v518 = vld [vmem:[#allocation5 + $0x910] sm:$0xff]
        %v519 = vld [vmem:[#allocation5 + $0x918] sm:$0xff]
        %v520 = vld [vmem:[#allocation5 + $0x920] sm:$0xff]
        %v521 = vld [vmem:[#allocation5 + $0x928] sm:$0xff]
        %v522 = vld [vmem:[#allocation5 + $0x930] sm:$0xff]
        %v523 = vld [vmem:[#allocation5 + $0x938] sm:$0xff]
        %v524 = vld [vmem:[#allocation5 + $0x940] sm:$0xff]
        %v525 = vld [vmem:[#allocation5 + $0x948] sm:$0xff]
        %v526 = vld [vmem:[#allocation5 + $0x950] sm:$0xff]
        %v527 = vld [vmem:[#allocation5 + $0x958] sm:$0xff]
        %v528 = vld [vmem:[#allocation5 + $0x960] sm:$0xff]
        %v529 = vld [vmem:[#allocation5 + $0x968] sm:$0xff]
        %v530 = vld [vmem:[#allocation5 + $0x970] sm:$0xff]
        %v531 = vld [vmem:[#allocation5 + $0x978] sm:$0xff]
        %v532 = vld [vmem:[#allocation5 + $0x980] sm:$0xff]
        %v533 = vld [vmem:[#allocation5 + $0x988] sm:$0xff]
        %v534 = vld [vmem:[#allocation5 + $0x990] sm:$0xff]
        %v535 = vld [vmem:[#allocation5 + $0x998] sm:$0xff]
        %v536 = vld [vmem:[#allocation5 + $0x9a0] sm:$0xff]
        %v537 = vld [vmem:[#allocation5 + $0x9a8] sm:$0xff]
        %v538 = vld [vmem:[#allocation5 + $0x9b0] sm:$0xff]
        %v539 = vld [vmem:[#allocation5 + $0x9b8] sm:$0xff]
        %v540 = vld [vmem:[#allocation5 + $0x9c0] sm:$0xff]
        %v541 = vld [vmem:[#allocation5 + $0x9c8] sm:$0xff]
        %v542 = vld [vmem:[#allocation5 + $0x9d0] sm:$0xff]
        %v543 = vld [vmem:[#allocation5 + $0x9d8] sm:$0xff]
        %v544 = vld [vmem:[#allocation5 + $0x9e0] sm:$0xff]
        %v545 = vld [vmem:[#allocation5 + $0x9e8] sm:$0xff]
        %v546 = vld [vmem:[#allocation5 + $0x9f0] sm:$0xff]
        %v547 = vld [vmem:[#allocation5 + $0x9f8] sm:$0xff]
        %v548 = vld [vmem:[#allocation5 + $0xa00] sm:$0xff]
        %v549 = vld [vmem:[#allocation5 + $0xa08] sm:$0xff]
        %v550 = vld [vmem:[#allocation5 + $0xa10] sm:$0xff]
        %v551 = vld [vmem:[#allocation5 + $0xa18] sm:$0xff]
        %v552 = vld [vmem:[#allocation5 + $0xa20] sm:$0xff]
        %v553 = vld [vmem:[#allocation5 + $0xa28] sm:$0xff]
        %v554 = vld [vmem:[#allocation5 + $0xa30] sm:$0xff]
        %v555 = vld [vmem:[#allocation5 + $0xa38] sm:$0xff]
        %v556 = vld [vmem:[#allocation5 + $0xa40] sm:$0xff]
        %v557 = vld [vmem:[#allocation5 + $0xa48] sm:$0xff]
        %v558 = vld [vmem:[#allocation5 + $0xa50] sm:$0xff]
        %v559 = vld [vmem:[#allocation5 + $0xa58] sm:$0xff]
        %v560 = vld [vmem:[#allocation5 + $0xa60] sm:$0xff]
        %v561 = vld [vmem:[#allocation5 + $0xa68] sm:$0xff]
        %v562 = vld [vmem:[#allocation5 + $0xa70] sm:$0xff]
        %v563 = vld [vmem:[#allocation5 + $0xa78] sm:$0xff]
        %v564 = vld [vmem:[#allocation5 + $0xa80] sm:$0xff]
        %v565 = vld [vmem:[#allocation5 + $0xa88] sm:$0xff]
        %v566 = vld [vmem:[#allocation5 + $0xa90] sm:$0xff]
        %v567 = vld [vmem:[#allocation5 + $0xa98] sm:$0xff]
        %v568 = vld [vmem:[#allocation5 + $0xaa0] sm:$0xff]
        %v569 = vld [vmem:[#allocation5 + $0xaa8] sm:$0xff]
        %v570 = vld [vmem:[#allocation5 + $0xab0] sm:$0xff]
        %v571 = vld [vmem:[#allocation5 + $0xab8] sm:$0xff]
        %v572 = vld [vmem:[#allocation5 + $0xac0] sm:$0xff]
        %v573 = vld [vmem:[#allocation5 + $0xac8] sm:$0xff]
        %v574 = vld [vmem:[#allocation5 + $0xad0] sm:$0xff]
        %v575 = vld [vmem:[#allocation5 + $0xad8] sm:$0xff]
        %v576 = vld [vmem:[#allocation5 + $0xae0] sm:$0xff]
        %v577 = vld [vmem:[#allocation5 + $0xae8] sm:$0xff]
        %v578 = vld [vmem:[#allocation5 + $0xaf0] sm:$0xff]
        %v579 = vld [vmem:[#allocation5 + $0xaf8] sm:$0xff]
        %v580 = vld [vmem:[#allocation5 + $0xb00] sm:$0xff]
        %v581 = vld [vmem:[#allocation5 + $0xb08] sm:$0xff]
        %v582 = vld [vmem:[#allocation5 + $0xb10] sm:$0xff]
        %v583 = vld [vmem:[#allocation5 + $0xb18] sm:$0xff]
        %v584 = vld [vmem:[#allocation5 + $0xb20] sm:$0xff]
        %v585 = vld [vmem:[#allocation5 + $0xb28] sm:$0xff]
        %v586 = vld [vmem:[#allocation5 + $0xb30] sm:$0xff]
        %v587 = vld [vmem:[#allocation5 + $0xb38] sm:$0xff]
        %v588 = vld [vmem:[#allocation5 + $0xb40] sm:$0xff]
        %v589 = vld [vmem:[#allocation5 + $0xb48] sm:$0xff]
        %v590 = vld [vmem:[#allocation5 + $0xb50] sm:$0xff]
        %v591 = vld [vmem:[#allocation5 + $0xb58] sm:$0xff]
        %v592 = vld [vmem:[#allocation5 + $0xb60] sm:$0xff]
        %v593 = vld [vmem:[#allocation5 + $0xb68] sm:$0xff]
        %v594 = vld [vmem:[#allocation5 + $0xb70] sm:$0xff]
        %v595 = vld [vmem:[#allocation5 + $0xb78] sm:$0xff]
        %v596 = vld [vmem:[#allocation5 + $0xb80] sm:$0xff]
        %v597 = vld [vmem:[#allocation5 + $0xb88] sm:$0xff]
        %v598 = vld [vmem:[#allocation5 + $0xb90] sm:$0xff]
        %v599 = vld [vmem:[#allocation5 + $0xb98] sm:$0xff]
        %v600 = vld [vmem:[#allocation5 + $0xba0] sm:$0xff]
        %v601 = vld [vmem:[#allocation5 + $0xba8] sm:$0xff]
        %v602 = vld [vmem:[#allocation5 + $0xbb0] sm:$0xff]
        %v603 = vld [vmem:[#allocation5 + $0xbb8] sm:$0xff]
        %v604 = vld [vmem:[#allocation5 + $0xbc0] sm:$0xff]
        %v605 = vld [vmem:[#allocation5 + $0xbc8] sm:$0xff]
        %v606 = vld [vmem:[#allocation5 + $0xbd0] sm:$0xff]
        %v607 = vld [vmem:[#allocation5 + $0xbd8] sm:$0xff]
        %v608 = vld [vmem:[#allocation5 + $0xbe0] sm:$0xff]
        %v609 = vld [vmem:[#allocation5 + $0xbe8] sm:$0xff]
        %v610 = vld [vmem:[#allocation5 + $0xbf0] sm:$0xff]
        %v611 = vld [vmem:[#allocation5 + $0xbf8] sm:$0xff]
        %612 = vmatprep.subr.mxu0 %v229
        %613 = vmatpush1.msra.mxu0 %v228
        %614 = vmatprep.subr.mxu0 %v237
        %615 = vmatpush1.msra.mxu0 %v236
        %616 = vmatprep.subr.mxu0 %v245
        %617 = vmatpush1.msra.mxu0 %v244
        %618 = vmatprep.subr.mxu0 %v253
        %619 = vmatpush1.msra.mxu0 %v252
        %620 = vmatprep.subr.mxu0 %v261
        %621 = vmatpush1.msra.mxu0 %v260
        %622 = vmatprep.subr.mxu0 %v269
        %623 = vmatpush1.msra.mxu0 %v268
        %624 = vmatprep.subr.mxu0 %v277
        %625 = vmatpush1.msra.mxu0 %v276
        %626 = vmatprep.subr.mxu0 %v285
        %627 = vmatpush1.msra.mxu0 %v284
        %628 = vmatprep.subr.mxu0 %v293
        %629 = vmatpush1.msra.mxu0 %v292
        %630 = vmatprep.subr.mxu0 %v301
        %631 = vmatpush1.msra.mxu0 %v300
        %632 = vmatprep.subr.mxu0 %v309
        %633 = vmatpush1.msra.mxu0 %v308
        %634 = vmatprep.subr.mxu0 %v317
        %635 = vmatpush1.msra.mxu0 %v316
        %636 = vmatprep.subr.mxu0 %v325
        %637 = vmatpush1.msra.mxu0 %v324
        %638 = vmatprep.subr.mxu0 %v333
        %639 = vmatpush1.msra.mxu0 %v332
        %640 = vmatprep.subr.mxu0 %v341
        %641 = vmatpush1.msra.mxu0 %v340
        %642 = vmatprep.subr.mxu0 %v349
        %643 = vmatpush1.msra.mxu0 %v348
        %644 = vmatprep.subr.mxu0 %v357
        %645 = vmatpush1.msra.mxu0 %v356
        %646 = vmatprep.subr.mxu0 %v365
        %647 = vmatpush1.msra.mxu0 %v364
        %648 = vmatprep.subr.mxu0 %v373
        %649 = vmatpush1.msra.mxu0 %v372
        %650 = vmatprep.subr.mxu0 %v381
        %651 = vmatpush1.msra.mxu0 %v380
        %652 = vmatprep.subr.mxu0 %v389
        %653 = vmatpush1.msra.mxu0 %v388
        %654 = vmatprep.subr.mxu0 %v397
        %655 = vmatpush1.msra.mxu0 %v396
        %656 = vmatprep.subr.mxu0 %v405
        %657 = vmatpush1.msra.mxu0 %v404
        %658 = vmatprep.subr.mxu0 %v413
        %659 = vmatpush1.msra.mxu0 %v412
        %660 = vmatprep.subr.mxu0 %v421
        %661 = vmatpush1.msra.mxu0 %v420
        %662 = vmatprep.subr.mxu0 %v429
        %663 = vmatpush1.msra.mxu0 %v428
        %664 = vmatprep.subr.mxu0 %v437
        %665 = vmatpush1.msra.mxu0 %v436
        %666 = vmatprep.subr.mxu0 %v445
        %667 = vmatpush1.msra.mxu0 %v444
        %668 = vmatprep.subr.mxu0 %v453
        %669 = vmatpush1.msra.mxu0 %v452
        %670 = vmatprep.subr.mxu0 %v461
        %671 = vmatpush1.msra.mxu0 %v460
        %672 = vmatprep.subr.mxu0 %v469
        %673 = vmatpush1.msra.mxu0 %v468
        %674 = vmatprep.subr.mxu0 %v477
        %675 = vmatpush1.msra.mxu0 %v476
        %676 = vmatprep.mubr.f32.mxu0 %v220
        %677 = vmatmul.mubr.f32.gmra.mrb[0].mxu0 %v219
        %v678 = vpop.f32.mrb[0].mxu0
        %v679 = vadd.f32 0.0, %v678
        %v680 = vpop.f32.mrb[0].mxu0
        %v681 = vadd.f32 0.0, %v680
        %682 = vmatprep.mubr.f32.mxu0 %v223
        %683 = vmatmul.mubr.f32.gmra.mrb[0].mxu0 %v222
        %v684 = vpop.f32.mrb[0].mxu0
        %v685 = vadd.f32 0.0, %v684
        %v686 = vpop.f32.mrb[0].mxu0
        %v687 = vadd.f32 0.0, %v686
        %688 = vmatprep.mubr.f32.mxu0 %v226
        %689 = vmatmul.mubr.f32.gmra.mrb[0].mxu0 %v225
        %v690 = vpop.f32.mrb[0].mxu0
        %v691 = vadd.f32 0.0, %v690
        %v692 = vpop.f32.mrb[0].mxu0
        %v693 = vadd.f32 0.0, %v692
        %694 = vdwg.mxu0
        %695 = vmatprep.subr.mxu0 %v485
        %696 = vmatpush1.msra.mxu0 %v484
        %697 = vmatprep.subr.mxu0 %v493
        %698 = vmatpush1.msra.mxu0 %v492
        %699 = vmatprep.subr.mxu0 %v501
        %700 = vmatpush1.msra.mxu0 %v500
        %701 = vmatprep.subr.mxu0 %v509
        %702 = vmatpush1.msra.mxu0 %v508
        %703 = vmatprep.subr.mxu0 %v517
        %704 = vmatpush1.msra.mxu0 %v516
        %705 = vmatprep.subr.mxu0 %v525
        %706 = vmatpush1.msra.mxu0 %v524
        %707 = vmatprep.subr.mxu0 %v533
        %708 = vmatpush1.msra.mxu0 %v532
        %709 = vmatprep.subr.mxu0 %v541
        %710 = vmatpush1.msra.mxu0 %v540
        %711 = vmatprep.subr.mxu0 %v549
        %712 = vmatpush1.msra.mxu0 %v548
        %713 = vmatprep.subr.mxu0 %v557
        %714 = vmatpush1.msra.mxu0 %v556
        %715 = vmatprep.subr.mxu0 %v565
        %716 = vmatpush1.msra.mxu0 %v564
        %717 = vmatprep.subr.mxu0 %v573
        %718 = vmatpush1.msra.mxu0 %v572
        %719 = vmatprep.subr.mxu0 %v581
        %720 = vmatpush1.msra.mxu0 %v580
        %721 = vmatprep.subr.mxu0 %v589
        %722 = vmatpush1.msra.mxu0 %v588
        %723 = vmatprep.subr.mxu0 %v597
        %724 = vmatpush1.msra.mxu0 %v596
        %725 = vmatprep.subr.mxu0 %v605
        %726 = vmatpush1.msra.mxu0 %v604
        %727 = vmatprep.subr.mxu0 0.0
        %728 = vmatpush1.msra.mxu0 0.0
        %729 = vmatprep.subr.mxu0 0.0
        %730 = vmatpush1.msra.mxu0 0.0
        %731 = vmatprep.subr.mxu0 0.0
        %732 = vmatpush1.msra.mxu0 0.0
        %733 = vmatprep.subr.mxu0 0.0
        %734 = vmatpush1.msra.mxu0 0.0
        %735 = vmatprep.subr.mxu0 0.0
        %736 = vmatpush1.msra.mxu0 0.0
        %737 = vmatprep.subr.mxu0 0.0
        %738 = vmatpush1.msra.mxu0 0.0
        %739 = vmatprep.subr.mxu0 0.0
        %740 = vmatpush1.msra.mxu0 0.0
        %741 = vmatprep.subr.mxu0 0.0
        %742 = vmatpush1.msra.mxu0 0.0
        %743 = vmatprep.subr.mxu0 0.0
        %744 = vmatpush1.msra.mxu0 0.0
        %745 = vmatprep.subr.mxu0 0.0
        %746 = vmatpush1.msra.mxu0 0.0
        %747 = vmatprep.subr.mxu0 0.0
        %748 = vmatpush1.msra.mxu0 0.0
        %749 = vmatprep.subr.mxu0 0.0
        %750 = vmatpush1.msra.mxu0 0.0
        %751 = vmatprep.subr.mxu0 0.0
        %752 = vmatpush1.msra.mxu0 0.0
        %753 = vmatprep.subr.mxu0 0.0
        %754 = vmatpush1.msra.mxu0 0.0
        %755 = vmatprep.subr.mxu0 0.0
        %756 = vmatpush1.msra.mxu0 0.0
        %757 = vmatprep.subr.mxu0 0.0
        %758 = vmatpush1.msra.mxu0 0.0
        %759 = vmatprep.mubr.f32.mxu0 0.0
        %760 = vmatmul.mubr.f32.gmra.mrb[0].mxu0 %v221
        %v761 = vpop.f32.mrb[0].mxu0
        %v762 = vadd.f32 %v679, %v761
        %v763 = vpop.f32.mrb[0].mxu0
        %v764 = vadd.f32 %v681, %v763
        %765 = vmatprep.mubr.f32.mxu0 0.0
        %766 = vmatmul.mubr.f32.gmra.mrb[0].mxu0 %v224
        %v767 = vpop.f32.mrb[0].mxu0
        %v768 = vadd.f32 %v685, %v767
        %v769 = vpop.f32.mrb[0].mxu0
        %v770 = vadd.f32 %v687, %v769
        %771 = vmatprep.mubr.f32.mxu0 0.0
        %772 = vmatmul.mubr.f32.gmra.mrb[0].mxu0 %v227
        %v773 = vpop.f32.mrb[0].mxu0
        %v774 = vadd.f32 %v691, %v773
        %v775 = vpop.f32.mrb[0].mxu0
        %v776 = vadd.f32 %v693, %v775
        %777 = vdwg.mxu0
        %778 = vmatprep.subr.mxu0 %v231
        %779 = vmatpush1.msra.mxu0 %v230
        %780 = vmatprep.subr.mxu0 %v239
        %781 = vmatpush1.msra.mxu0 %v238
        %782 = vmatprep.subr.mxu0 %v247
        %783 = vmatpush1.msra.mxu0 %v246
        %784 = vmatprep.subr.mxu0 %v255
        %785 = vmatpush1.msra.mxu0 %v254
        %786 = vmatprep.subr.mxu0 %v263
        %787 = vmatpush1.msra.mxu0 %v262
        %788 = vmatprep.subr.mxu0 %v271
        %789 = vmatpush1.msra.mxu0 %v270
        %790 = vmatprep.subr.mxu0 %v279
        %791 = vmatpush1.msra.mxu0 %v278
        %792 = vmatprep.subr.mxu0 %v287
        %793 = vmatpush1.msra.mxu0 %v286
        %794 = vmatprep.subr.mxu0 %v295
        %795 = vmatpush1.msra.mxu0 %v294
        %796 = vmatprep.subr.mxu0 %v303
        %797 = vmatpush1.msra.mxu0 %v302
        %798 = vmatprep.subr.mxu0 %v311
        %799 = vmatpush1.msra.mxu0 %v310
        %800 = vmatprep.subr.mxu0 %v319
        %801 = vmatpush1.msra.mxu0 %v318
        %802 = vmatprep.subr.mxu0 %v327
        %803 = vmatpush1.msra.mxu0 %v326
        %804 = vmatprep.subr.mxu0 %v335
        %805 = vmatpush1.msra.mxu0 %v334
        %806 = vmatprep.subr.mxu0 %v343
        %807 = vmatpush1.msra.mxu0 %v342
        %808 = vmatprep.subr.mxu0 %v351
        %809 = vmatpush1.msra.mxu0 %v350
        %810 = vmatprep.subr.mxu0 %v359
        %811 = vmatpush1.msra.mxu0 %v358
        %812 = vmatprep.subr.mxu0 %v367
        %813 = vmatpush1.msra.mxu0 %v366
        %814 = vmatprep.subr.mxu0 %v375
        %815 = vmatpush1.msra.mxu0 %v374
        %816 = vmatprep.subr.mxu0 %v383
        %817 = vmatpush1.msra.mxu0 %v382
        %818 = vmatprep.subr.mxu0 %v391
        %819 = vmatpush1.msra.mxu0 %v390
        %820 = vmatprep.subr.mxu0 %v399
        %821 = vmatpush1.msra.mxu0 %v398
        %822 = vmatprep.subr.mxu0 %v407
        %823 = vmatpush1.msra.mxu0 %v406
        %824 = vmatprep.subr.mxu0 %v415
        %825 = vmatpush1.msra.mxu0 %v414
        %826 = vmatprep.subr.mxu0 %v423
        %827 = vmatpush1.msra.mxu0 %v422
        %828 = vmatprep.subr.mxu0 %v431
        %829 = vmatpush1.msra.mxu0 %v430
        %830 = vmatprep.subr.mxu0 %v439
        %831 = vmatpush1.msra.mxu0 %v438
        %832 = vmatprep.subr.mxu0 %v447
        %833 = vmatpush1.msra.mxu0 %v446
        %834 = vmatprep.subr.mxu0 %v455
        %835 = vmatpush1.msra.mxu0 %v454
        %836 = vmatprep.subr.mxu0 %v463
        %837 = vmatpush1.msra.mxu0 %v462
        %838 = vmatprep.subr.mxu0 %v471
        %839 = vmatpush1.msra.mxu0 %v470
        %840 = vmatprep.subr.mxu0 %v479
        %841 = vmatpush1.msra.mxu0 %v478
        %842 = vmatprep.mubr.f32.mxu0 %v220
        %843 = vmatmul.mubr.f32.gmra.mrb[0].mxu0 %v219
        %v844 = vpop.f32.mrb[0].mxu0
        %v845 = vadd.f32 0.0, %v844
        %v846 = vpop.f32.mrb[0].mxu0
        %v847 = vadd.f32 0.0, %v846
        %848 = vmatprep.mubr.f32.mxu0 %v223
        %849 = vmatmul.mubr.f32.gmra.mrb[0].mxu0 %v222
        %v850 = vpop.f32.mrb[0].mxu0
        %v851 = vadd.f32 0.0, %v850
        %v852 = vpop.f32.mrb[0].mxu0
        %v853 = vadd.f32 0.0, %v852
        %854 = vmatprep.mubr.f32.mxu0 %v226
        %855 = vmatmul.mubr.f32.gmra.mrb[0].mxu0 %v225
        %v856 = vpop.f32.mrb[0].mxu0
        %v857 = vadd.f32 0.0, %v856
        %v858 = vpop.f32.mrb[0].mxu0
        %v859 = vadd.f32 0.0, %v858
        %860 = vdwg.mxu0
        %861 = vmatprep.subr.mxu0 %v487
        %862 = vmatpush1.msra.mxu0 %v486
        %863 = vmatprep.subr.mxu0 %v495
        %864 = vmatpush1.msra.mxu0 %v494
        %865 = vmatprep.subr.mxu0 %v503
        %866 = vmatpush1.msra.mxu0 %v502
        %867 = vmatprep.subr.mxu0 %v511
        %868 = vmatpush1.msra.mxu0 %v510
        %869 = vmatprep.subr.mxu0 %v519
        %870 = vmatpush1.msra.mxu0 %v518
        %871 = vmatprep.subr.mxu0 %v527
        %872 = vmatpush1.msra.mxu0 %v526
        %873 = vmatprep.subr.mxu0 %v535
        %874 = vmatpush1.msra.mxu0 %v534
        %875 = vmatprep.subr.mxu0 %v543
        %876 = vmatpush1.msra.mxu0 %v542
        %877 = vmatprep.subr.mxu0 %v551
        %878 = vmatpush1.msra.mxu0 %v550
        %879 = vmatprep.subr.mxu0 %v559
        %880 = vmatpush1.msra.mxu0 %v558
        %881 = vmatprep.subr.mxu0 %v567
        %882 = vmatpush1.msra.mxu0 %v566
        %883 = vmatprep.subr.mxu0 %v575
        %884 = vmatpush1.msra.mxu0 %v574
        %885 = vmatprep.subr.mxu0 %v583
        %886 = vmatpush1.msra.mxu0 %v582
        %887 = vmatprep.subr.mxu0 %v591
        %888 = vmatpush1.msra.mxu0 %v590
        %889 = vmatprep.subr.mxu0 %v599
        %890 = vmatpush1.msra.mxu0 %v598
        %891 = vmatprep.subr.mxu0 %v607
        %892 = vmatpush1.msra.mxu0 %v606
        %893 = vmatprep.subr.mxu0 0.0
        %894 = vmatpush1.msra.mxu0 0.0
        %895 = vmatprep.subr.mxu0 0.0
        %896 = vmatpush1.msra.mxu0 0.0
        %897 = vmatprep.subr.mxu0 0.0
        %898 = vmatpush1.msra.mxu0 0.0
        %899 = vmatprep.subr.mxu0 0.0
        %900 = vmatpush1.msra.mxu0 0.0
        %901 = vmatprep.subr.mxu0 0.0
        %902 = vmatpush1.msra.mxu0 0.0
        %903 = vmatprep.subr.mxu0 0.0
        %904 = vmatpush1.msra.mxu0 0.0
        %905 = vmatprep.subr.mxu0 0.0
        %906 = vmatpush1.msra.mxu0 0.0
        %907 = vmatprep.subr.mxu0 0.0
        %908 = vmatpush1.msra.mxu0 0.0
        %909 = vmatprep.subr.mxu0 0.0
        %910 = vmatpush1.msra.mxu0 0.0
        %911 = vmatprep.subr.mxu0 0.0
        %912 = vmatpush1.msra.mxu0 0.0
        %913 = vmatprep.subr.mxu0 0.0
        %914 = vmatpush1.msra.mxu0 0.0
        %915 = vmatprep.subr.mxu0 0.0
        %916 = vmatpush1.msra.mxu0 0.0
        %917 = vmatprep.subr.mxu0 0.0
        %918 = vmatpush1.msra.mxu0 0.0
        %919 = vmatprep.subr.mxu0 0.0
        %920 = vmatpush1.msra.mxu0 0.0
        %921 = vmatprep.subr.mxu0 0.0
        %922 = vmatpush1.msra.mxu0 0.0
        %923 = vmatprep.subr.mxu0 0.0
        %924 = vmatpush1.msra.mxu0 0.0
        %925 = vmatprep.mubr.f32.mxu0 0.0
        %926 = vmatmul.mubr.f32.gmra.mrb[0].mxu0 %v221
        %v927 = vpop.f32.mrb[0].mxu0
        %v928 = vadd.f32 %v845, %v927
        %v929 = vpop.f32.mrb[0].mxu0
        %v930 = vadd.f32 %v847, %v929
        %931 = vmatprep.mubr.f32.mxu0 0.0
        %932 = vmatmul.mubr.f32.gmra.mrb[0].mxu0 %v224
        %v933 = vpop.f32.mrb[0].mxu0
        %v934 = vadd.f32 %v851, %v933
        %v935 = vpop.f32.mrb[0].mxu0
        %v936 = vadd.f32 %v853, %v935
        %937 = vmatprep.mubr.f32.mxu0 0.0
        %938 = vmatmul.mubr.f32.gmra.mrb[0].mxu0 %v227
        %v939 = vpop.f32.mrb[0].mxu0
        %v940 = vadd.f32 %v857, %v939
        %v941 = vpop.f32.mrb[0].mxu0
        %v942 = vadd.f32 %v859, %v941
        %943 = vdwg.mxu0
        %944 = vmatprep.subr.mxu0 %v233
        %945 = vmatpush1.msra.mxu0 %v232
        %946 = vmatprep.subr.mxu0 %v241
        %947 = vmatpush1.msra.mxu0 %v240
        %948 = vmatprep.subr.mxu0 %v249
        %949 = vmatpush1.msra.mxu0 %v248
        %950 = vmatprep.subr.mxu0 %v257
        %951 = vmatpush1.msra.mxu0 %v256
        %952 = vmatprep.subr.mxu0 %v265
        %953 = vmatpush1.msra.mxu0 %v264
        %954 = vmatprep.subr.mxu0 %v273
        %955 = vmatpush1.msra.mxu0 %v272
        %956 = vmatprep.subr.mxu0 %v281
        %957 = vmatpush1.msra.mxu0 %v280
        %958 = vmatprep.subr.mxu0 %v289
        %959 = vmatpush1.msra.mxu0 %v288
        %960 = vmatprep.subr.mxu0 %v297
        %961 = vmatpush1.msra.mxu0 %v296
        %962 = vmatprep.subr.mxu0 %v305
        %963 = vmatpush1.msra.mxu0 %v304
        %964 = vmatprep.subr.mxu0 %v313
        %965 = vmatpush1.msra.mxu0 %v312
        %966 = vmatprep.subr.mxu0 %v321
        %967 = vmatpush1.msra.mxu0 %v320
        %968 = vmatprep.subr.mxu0 %v329
        %969 = vmatpush1.msra.mxu0 %v328
        %970 = vmatprep.subr.mxu0 %v337
        %971 = vmatpush1.msra.mxu0 %v336
        %972 = vmatprep.subr.mxu0 %v345
        %973 = vmatpush1.msra.mxu0 %v344
        %974 = vmatprep.subr.mxu0 %v353
        %975 = vmatpush1.msra.mxu0 %v352
        %976 = vmatprep.subr.mxu0 %v361
        %977 = vmatpush1.msra.mxu0 %v360
        %978 = vmatprep.subr.mxu0 %v369
        %979 = vmatpush1.msra.mxu0 %v368
        %980 = vmatprep.subr.mxu0 %v377
        %981 = vmatpush1.msra.mxu0 %v376
        %982 = vmatprep.subr.mxu0 %v385
        %983 = vmatpush1.msra.mxu0 %v384
        %984 = vmatprep.subr.mxu0 %v393
        %985 = vmatpush1.msra.mxu0 %v392
        %986 = vmatprep.subr.mxu0 %v401
        %987 = vmatpush1.msra.mxu0 %v400
        %988 = vmatprep.subr.mxu0 %v409
        %989 = vmatpush1.msra.mxu0 %v408
        %990 = vmatprep.subr.mxu0 %v417
        %991 = vmatpush1.msra.mxu0 %v416
        %992 = vmatprep.subr.mxu0 %v425
        %993 = vmatpush1.msra.mxu0 %v424
        %994 = vmatprep.subr.mxu0 %v433
        %995 = vmatpush1.msra.mxu0 %v432
        %996 = vmatprep.subr.mxu0 %v441
        %997 = vmatpush1.msra.mxu0 %v440
        %998 = vmatprep.subr.mxu0 %v449
        %999 = vmatpush1.msra.mxu0 %v448
        %1000 = vmatprep.subr.mxu0 %v457
        %1001 = vmatpush1.msra.mxu0 %v456
        %1002 = vmatprep.subr.mxu0 %v465
        %1003 = vmatpush1.msra.mxu0 %v464
        %1004 = vmatprep.subr.mxu0 %v473
        %1005 = vmatpush1.msra.mxu0 %v472
        %1006 = vmatprep.subr.mxu0 %v481
        %1007 = vmatpush1.msra.mxu0 %v480
        %1008 = vmatprep.mubr.f32.mxu0 %v220
        %1009 = vmatmul.mubr.f32.gmra.mrb[0].mxu0 %v219
        %v1010 = vpop.f32.mrb[0].mxu0
        %v1011 = vadd.f32 0.0, %v1010
        %v1012 = vpop.f32.mrb[0].mxu0
        %v1013 = vadd.f32 0.0, %v1012
        %1014 = vmatprep.mubr.f32.mxu0 %v223
        %1015 = vmatmul.mubr.f32.gmra.mrb[0].mxu0 %v222
        %v1016 = vpop.f32.mrb[0].mxu0
        %v1017 = vadd.f32 0.0, %v1016
        %v1018 = vpop.f32.mrb[0].mxu0
        %v1019 = vadd.f32 0.0, %v1018
        %1020 = vmatprep.mubr.f32.mxu0 %v226
        %1021 = vmatmul.mubr.f32.gmra.mrb[0].mxu0 %v225
        %v1022 = vpop.f32.mrb[0].mxu0
        %v1023 = vadd.f32 0.0, %v1022
        %v1024 = vpop.f32.mrb[0].mxu0
        %v1025 = vadd.f32 0.0, %v1024
        %1026 = vdwg.mxu0
        %1027 = vmatprep.subr.mxu0 %v489
        %1028 = vmatpush1.msra.mxu0 %v488
        %1029 = vmatprep.subr.mxu0 %v497
        %1030 = vmatpush1.msra.mxu0 %v496
        %1031 = vmatprep.subr.mxu0 %v505
        %1032 = vmatpush1.msra.mxu0 %v504
        %1033 = vmatprep.subr.mxu0 %v513
        %1034 = vmatpush1.msra.mxu0 %v512
        %1035 = vmatprep.subr.mxu0 %v521
        %1036 = vmatpush1.msra.mxu0 %v520
        %1037 = vmatprep.subr.mxu0 %v529
        %1038 = vmatpush1.msra.mxu0 %v528
        %1039 = vmatprep.subr.mxu0 %v537
        %1040 = vmatpush1.msra.mxu0 %v536
        %1041 = vmatprep.subr.mxu0 %v545
        %1042 = vmatpush1.msra.mxu0 %v544
        %1043 = vmatprep.subr.mxu0 %v553
        %1044 = vmatpush1.msra.mxu0 %v552
        %1045 = vmatprep.subr.mxu0 %v561
        %1046 = vmatpush1.msra.mxu0 %v560
        %1047 = vmatprep.subr.mxu0 %v569
        %1048 = vmatpush1.msra.mxu0 %v568
        %1049 = vmatprep.subr.mxu0 %v577
        %1050 = vmatpush1.msra.mxu0 %v576
        %1051 = vmatprep.subr.mxu0 %v585
        %1052 = vmatpush1.msra.mxu0 %v584
        %1053 = vmatprep.subr.mxu0 %v593
        %1054 = vmatpush1.msra.mxu0 %v592
        %1055 = vmatprep.subr.mxu0 %v601
        %1056 = vmatpush1.msra.mxu0 %v600
        %1057 = vmatprep.subr.mxu0 %v609
        %1058 = vmatpush1.msra.mxu0 %v608
        %1059 = vmatprep.subr.mxu0 0.0
        %1060 = vmatpush1.msra.mxu0 0.0
        %1061 = vmatprep.subr.mxu0 0.0
        %1062 = vmatpush1.msra.mxu0 0.0
        %1063 = vmatprep.subr.mxu0 0.0
        %1064 = vmatpush1.msra.mxu0 0.0
        %1065 = vmatprep.subr.mxu0 0.0
        %1066 = vmatpush1.msra.mxu0 0.0
        %1067 = vmatprep.subr.mxu0 0.0
        %1068 = vmatpush1.msra.mxu0 0.0
        %1069 = vmatprep.subr.mxu0 0.0
        %1070 = vmatpush1.msra.mxu0 0.0
        %1071 = vmatprep.subr.mxu0 0.0
        %1072 = vmatpush1.msra.mxu0 0.0
        %1073 = vmatprep.subr.mxu0 0.0
        %1074 = vmatpush1.msra.mxu0 0.0
        %1075 = vmatprep.subr.mxu0 0.0
        %1076 = vmatpush1.msra.mxu0 0.0
        %1077 = vmatprep.subr.mxu0 0.0
        %1078 = vmatpush1.msra.mxu0 0.0
        %1079 = vmatprep.subr.mxu0 0.0
        %1080 = vmatpush1.msra.mxu0 0.0
        %1081 = vmatprep.subr.mxu0 0.0
        %1082 = vmatpush1.msra.mxu0 0.0
        %1083 = vmatprep.subr.mxu0 0.0
        %1084 = vmatpush1.msra.mxu0 0.0
        %1085 = vmatprep.subr.mxu0 0.0
        %1086 = vmatpush1.msra.mxu0 0.0
        %1087 = vmatprep.subr.mxu0 0.0
        %1088 = vmatpush1.msra.mxu0 0.0
        %1089 = vmatprep.subr.mxu0 0.0
        %1090 = vmatpush1.msra.mxu0 0.0
        %1091 = vmatprep.mubr.f32.mxu0 0.0
        %1092 = vmatmul.mubr.f32.gmra.mrb[0].mxu0 %v221
        %v1093 = vpop.f32.mrb[0].mxu0
        %v1094 = vadd.f32 %v1011, %v1093
        %v1095 = vpop.f32.mrb[0].mxu0
        %v1096 = vadd.f32 %v1013, %v1095
        %1097 = vmatprep.mubr.f32.mxu0 0.0
        %1098 = vmatmul.mubr.f32.gmra.mrb[0].mxu0 %v224
        %v1099 = vpop.f32.mrb[0].mxu0
        %v1100 = vadd.f32 %v1017, %v1099
        %v1101 = vpop.f32.mrb[0].mxu0
        %v1102 = vadd.f32 %v1019, %v1101
        %1103 = vmatprep.mubr.f32.mxu0 0.0
        %1104 = vmatmul.mubr.f32.gmra.mrb[0].mxu0 %v227
        %v1105 = vpop.f32.mrb[0].mxu0
        %v1106 = vadd.f32 %v1023, %v1105
        %v1107 = vpop.f32.mrb[0].mxu0
        %v1108 = vadd.f32 %v1025, %v1107
        %1109 = vdwg.mxu0
        %1110 = vmatprep.subr.mxu0 %v235
        %1111 = vmatpush1.msra.mxu0 %v234
        %1112 = vmatprep.subr.mxu0 %v243
        %1113 = vmatpush1.msra.mxu0 %v242
        %1114 = vmatprep.subr.mxu0 %v251
        %1115 = vmatpush1.msra.mxu0 %v250
        %1116 = vmatprep.subr.mxu0 %v259
        %1117 = vmatpush1.msra.mxu0 %v258
        %1118 = vmatprep.subr.mxu0 %v267
        %1119 = vmatpush1.msra.mxu0 %v266
        %1120 = vmatprep.subr.mxu0 %v275
        %1121 = vmatpush1.msra.mxu0 %v274
        %1122 = vmatprep.subr.mxu0 %v283
        %1123 = vmatpush1.msra.mxu0 %v282
        %1124 = vmatprep.subr.mxu0 %v291
        %1125 = vmatpush1.msra.mxu0 %v290
        %1126 = vmatprep.subr.mxu0 %v299
        %1127 = vmatpush1.msra.mxu0 %v298
        %1128 = vmatprep.subr.mxu0 %v307
        %1129 = vmatpush1.msra.mxu0 %v306
        %1130 = vmatprep.subr.mxu0 %v315
        %1131 = vmatpush1.msra.mxu0 %v314
        %1132 = vmatprep.subr.mxu0 %v323
        %1133 = vmatpush1.msra.mxu0 %v322
        %1134 = vmatprep.subr.mxu0 %v331
        %1135 = vmatpush1.msra.mxu0 %v330
        %1136 = vmatprep.subr.mxu0 %v339
        %1137 = vmatpush1.msra.mxu0 %v338
        %1138 = vmatprep.subr.mxu0 %v347
        %1139 = vmatpush1.msra.mxu0 %v346
        %1140 = vmatprep.subr.mxu0 %v355
        %1141 = vmatpush1.msra.mxu0 %v354
        %1142 = vmatprep.subr.mxu0 %v363
        %1143 = vmatpush1.msra.mxu0 %v362
        %1144 = vmatprep.subr.mxu0 %v371
        %1145 = vmatpush1.msra.mxu0 %v370
        %1146 = vmatprep.subr.mxu0 %v379
        %1147 = vmatpush1.msra.mxu0 %v378
        %1148 = vmatprep.subr.mxu0 %v387
        %1149 = vmatpush1.msra.mxu0 %v386
        %1150 = vmatprep.subr.mxu0 %v395
        %1151 = vmatpush1.msra.mxu0 %v394
        %1152 = vmatprep.subr.mxu0 %v403
        %1153 = vmatpush1.msra.mxu0 %v402
        %1154 = vmatprep.subr.mxu0 %v411
        %1155 = vmatpush1.msra.mxu0 %v410
        %1156 = vmatprep.subr.mxu0 %v419
        %1157 = vmatpush1.msra.mxu0 %v418
        %1158 = vmatprep.subr.mxu0 %v427
        %1159 = vmatpush1.msra.mxu0 %v426
        %1160 = vmatprep.subr.mxu0 %v435
        %1161 = vmatpush1.msra.mxu0 %v434
        %1162 = vmatprep.subr.mxu0 %v443
        %1163 = vmatpush1.msra.mxu0 %v442
        %1164 = vmatprep.subr.mxu0 %v451
        %1165 = vmatpush1.msra.mxu0 %v450
        %1166 = vmatprep.subr.mxu0 %v459
        %1167 = vmatpush1.msra.mxu0 %v458
        %1168 = vmatprep.subr.mxu0 %v467
        %1169 = vmatpush1.msra.mxu0 %v466
        %1170 = vmatprep.subr.mxu0 %v475
        %1171 = vmatpush1.msra.mxu0 %v474
        %1172 = vmatprep.subr.mxu0 %v483
        %1173 = vmatpush1.msra.mxu0 %v482
        %1174 = vmatprep.mubr.f32.mxu0 %v220
        %1175 = vmatmul.mubr.f32.gmra.mrb[0].mxu0 %v219
        %v1176 = vpop.f32.mrb[0].mxu0
        %v1177 = vadd.f32 0.0, %v1176
        %v1178 = vpop.f32.mrb[0].mxu0
        %v1179 = vadd.f32 0.0, %v1178
        %1180 = vmatprep.mubr.f32.mxu0 %v223
        %1181 = vmatmul.mubr.f32.gmra.mrb[0].mxu0 %v222
        %v1182 = vpop.f32.mrb[0].mxu0
        %v1183 = vadd.f32 0.0, %v1182
        %v1184 = vpop.f32.mrb[0].mxu0
        %v1185 = vadd.f32 0.0, %v1184
        %1186 = vmatprep.mubr.f32.mxu0 %v226
        %1187 = vmatmul.mubr.f32.gmra.mrb[0].mxu0 %v225
        %v1188 = vpop.f32.mrb[0].mxu0
        %v1189 = vadd.f32 0.0, %v1188
        %v1190 = vpop.f32.mrb[0].mxu0
        %v1191 = vadd.f32 0.0, %v1190
        %1192 = vdwg.mxu0
        %1193 = vmatprep.subr.mxu0 %v491
        %1194 = vmatpush1.msra.mxu0 %v490
        %1195 = vmatprep.subr.mxu0 %v499
        %1196 = vmatpush1.msra.mxu0 %v498
        %1197 = vmatprep.subr.mxu0 %v507
        %1198 = vmatpush1.msra.mxu0 %v506
        %1199 = vmatprep.subr.mxu0 %v515
        %1200 = vmatpush1.msra.mxu0 %v514
        %1201 = vmatprep.subr.mxu0 %v523
        %1202 = vmatpush1.msra.mxu0 %v522
        %1203 = vmatprep.subr.mxu0 %v531
        %1204 = vmatpush1.msra.mxu0 %v530
        %1205 = vmatprep.subr.mxu0 %v539
        %1206 = vmatpush1.msra.mxu0 %v538
        %1207 = vmatprep.subr.mxu0 %v547
        %1208 = vmatpush1.msra.mxu0 %v546
        %1209 = vmatprep.subr.mxu0 %v555
        %1210 = vmatpush1.msra.mxu0 %v554
        %1211 = vmatprep.subr.mxu0 %v563
        %1212 = vmatpush1.msra.mxu0 %v562
        %1213 = vmatprep.subr.mxu0 %v571
        %1214 = vmatpush1.msra.mxu0 %v570
        %1215 = vmatprep.subr.mxu0 %v579
        %1216 = vmatpush1.msra.mxu0 %v578
        %1217 = vmatprep.subr.mxu0 %v587
        %1218 = vmatpush1.msra.mxu0 %v586
        %1219 = vmatprep.subr.mxu0 %v595
        %1220 = vmatpush1.msra.mxu0 %v594
        %1221 = vmatprep.subr.mxu0 %v603
        %1222 = vmatpush1.msra.mxu0 %v602
        %1223 = vmatprep.subr.mxu0 %v611
        %1224 = vmatpush1.msra.mxu0 %v610
        %1225 = vmatprep.subr.mxu0 0.0
        %1226 = vmatpush1.msra.mxu0 0.0
        %1227 = vmatprep.subr.mxu0 0.0
        %1228 = vmatpush1.msra.mxu0 0.0
        %1229 = vmatprep.subr.mxu0 0.0
        %1230 = vmatpush1.msra.mxu0 0.0
        %1231 = vmatprep.subr.mxu0 0.0
        %1232 = vmatpush1.msra.mxu0 0.0
        %1233 = vmatprep.subr.mxu0 0.0
        %1234 = vmatpush1.msra.mxu0 0.0
        %1235 = vmatprep.subr.mxu0 0.0
        %1236 = vmatpush1.msra.mxu0 0.0
        %1237 = vmatprep.subr.mxu0 0.0
        %1238 = vmatpush1.msra.mxu0 0.0
        %1239 = vmatprep.subr.mxu0 0.0
        %1240 = vmatpush1.msra.mxu0 0.0
        %1241 = vmatprep.subr.mxu0 0.0
        %1242 = vmatpush1.msra.mxu0 0.0
        %1243 = vmatprep.subr.mxu0 0.0
        %1244 = vmatpush1.msra.mxu0 0.0
        %1245 = vmatprep.subr.mxu0 0.0
        %1246 = vmatpush1.msra.mxu0 0.0
        %1247 = vmatprep.subr.mxu0 0.0
        %1248 = vmatpush1.msra.mxu0 0.0
        %1249 = vmatprep.subr.mxu0 0.0
        %1250 = vmatpush1.msra.mxu0 0.0
        %1251 = vmatprep.subr.mxu0 0.0
        %1252 = vmatpush1.msra.mxu0 0.0
        %1253 = vmatprep.subr.mxu0 0.0
        %1254 = vmatpush1.msra.mxu0 0.0
        %1255 = vmatprep.subr.mxu0 0.0
        %1256 = vmatpush1.msra.mxu0 0.0
        %1257 = vmatprep.mubr.f32.mxu0 0.0
        %1258 = vmatmul.mubr.f32.gmra.mrb[0].mxu0 %v221
        %v1259 = vpop.f32.mrb[0].mxu0
        %v1260 = vadd.f32 %v1177, %v1259
        %v1261 = vpop.f32.mrb[0].mxu0
        %v1262 = vadd.f32 %v1179, %v1261
        %1263 = vmatprep.mubr.f32.mxu0 0.0
        %1264 = vmatmul.mubr.f32.gmra.mrb[0].mxu0 %v224
        %v1265 = vpop.f32.mrb[0].mxu0
        %v1266 = vadd.f32 %v1183, %v1265
        %v1267 = vpop.f32.mrb[0].mxu0
        %v1268 = vadd.f32 %v1185, %v1267
        %1269 = vmatprep.mubr.f32.mxu0 0.0
        %1270 = vmatmul.mubr.f32.gmra.mrb[0].mxu0 %v227
        %v1271 = vpop.f32.mrb[0].mxu0
        %v1272 = vadd.f32 %v1189, %v1271
        %v1273 = vpop.f32.mrb[0].mxu0
        %v1274 = vadd.f32 %v1191, %v1273
        %1275 = vdwg.mxu0
        %v1276 = vmax.f32 %v762, %v764
        %v1277 = vmax.f32 %v768, %v770
        %v1278 = vmax.f32 %v774, %v776
        %v1279 = vmax.f32 %v1276, %v928
        %v1280 = vmax.f32 %v1277, %v934
        %v1281 = vmax.f32 %v1278, %v940
        %v1282 = vmax.f32 %v1279, %v930
        %v1283 = vmax.f32 %v1280, %v936
        %v1284 = vmax.f32 %v1281, %v942
        %v1285 = vmax.f32 %v1282, %v1094
        %v1286 = vmax.f32 %v1283, %v1100
        %v1287 = vmax.f32 %v1284, %v1106
        %v1288 = vmax.f32 %v1285, %v1096
        %v1289 = vmax.f32 %v1286, %v1102
        %v1290 = vmax.f32 %v1287, %v1108
        %v1291 = vmax.f32 %v1288, %v1260
        %v1292 = vmax.f32 %v1289, %v1266
        %v1293 = vmax.f32 %v1290, %v1272
        %v1294 = vmax.f32 %v1291, %v1262
        %v1295 = vmax.f32 %v1292, %v1268
        %v1296 = vmax.f32 %v1293, %v1274
        %v1297 = vld [vmem:[#allocation7] sm:$0x1]
        %v1299 = vlaneseq
        %v1300 = vshrl.u32 %v1299, 7
        %v1301 = vsub.s32 0, %v1300
        %v1302 = vrot.slane %v1297, %v1301
        %v1304 = vadd.f32 %v1294, %v1302
        %v1305 = vadd.f32 %v1295, %v1302
        %v1306 = vadd.f32 %v1296, %v1302
        %v1307 = vmax.f32 %v1304, 0.0
        %v1308 = vmax.f32 %v1305, 0.0
        %v1309 = vmax.f32 %v1306, 0.0
        %1310 = vst [vmem:[%s216] sm:$0xff] %v1307
        %1311 = vst [vmem:[%s216 + $0x8] sm:$0xff] %v1308
        %1312 = vst [vmem:[%s216 + $0x10] sm:$0xff] %v1309
        %s1313 = sand.u32 %s97, 1
        %s1314 = scalar_lea.sflag [#allocation4], %s1313
        %s1315 = sand.u32 %s97, 1
        %s1316 = smul.addr %s1315, 24
        %s1317 = scalar_lea.vmem [#allocation8], %s1316
        // Predicated region
        $region45: #{tpu_custom_call.1} parent=31 // pred_check
          %p1318 = pneg %p107
        $region46: #{tpu_custom_call.1} parent=31 // pred_check_branch
          %1320 = sbr.rel (%p1318) target = $region48
        $region47: #{tpu_custom_call.1} parent=31 // pred_region
          %s1321 = smul.u32 3, %s21
          %s1323 = ssub.s32 384, 384
          %1324 = vsyncadd %s1314, %s1323
          %s1325 = smul.addr %s1321, 128
          %s1326 = scalar_lea.hbm %s3, %s1325
          %s1327 = sshll.u32 %s1317, 4
          %s1328 = int_to_ptr.vmem [resolvable:$true] %s1327
          %1333 = dma.vmem_to_hbm [thread:$0]  %s1328, 384, %s1326, %s1314, 128, 128, 8
        $region48: #{tpu_custom_call.1} parent=31 // pred_fallthru
          _
      $region32: #{tpu_custom_call.1} parent=5 // pred_fallthru
        _
      %p1334 = scmp.le.s32.totalorder 2, %s16
      // Predicated region
      $region49: #{tpu_custom_call.1} parent=5 // pred_check
        %p1335 = pneg %p1334
      $region50: #{tpu_custom_call.1} parent=5 // pred_check_branch
        %1337 = sbr.rel (%p1335) target = $region52
      $region51: #{tpu_custom_call.1} parent=5 // pred_region
        %s1338 = ssub.s32 %s16, 2
        // Predicated region
        $region53: #{tpu_custom_call.1} parent=51 // pred_check
          %p1339 = pneg %p113
        $region54: #{tpu_custom_call.1} parent=51 // pred_check_branch
          %1341 = sbr.rel (%p1339) target = $region56
        $region55: #{tpu_custom_call.1} parent=51 // pred_region
          %s1342 = sand.u32 %s98, 1
          %s1343 = scalar_lea.sflag [#allocation4], %s1342
          %s1344 = sand.u32 %s98, 1
          %s1345 = smul.addr %s1344, 24
          %s1346 = scalar_lea.vmem [#allocation8], %s1345
          %1347 = dma.done %s1343, 384
        $region56: #{tpu_custom_call.1} parent=51 // pred_fallthru
          _
      $region52: #{tpu_custom_call.1} parent=5 // pred_fallthru
        _
    $region6: #{tpu_custom_call.1} parent=1 // loop_footer
      %s20 = sadd.s32 1, %s16
    $region7: #{tpu_custom_call.1} parent=1 // loop_footer_branch
      %15 = sbr.rel target = $region3
    $region8: #{tpu_custom_call.1} parent=1 // loop_exit
      _
    %1348 = vsyncpa [#allocation3], 1
    %s1349 = scalar_lea.sflag [#allocation3], 1
    %1350 = vsyncpa %s1349, 1
    %1351 = vsyncpa [#allocation6], 1
    %1352 = vsyncpa [#allocation4], 1
    %s1353 = scalar_lea.sflag [#allocation4], 1
    %1354 = vsyncpa %s1353, 1

</llo_original>
